<compile_context>
chip_gen: v6e
topology: v6e:2x2x1
jax: 0.10.0
libtpu: 0.0.40
codegen_flags: <defaults>
</compile_context>

<pallas_src>
import functools
import math

import jax
import jax.numpy as jnp
from jax.experimental import pallas as pl
from jax.experimental.pallas import tpu as pltpu


def mhsa_kernel(x_ref,
                wq_ref, bq_ref, wk_ref, bk_ref, wv_ref, bv_ref, wo_ref, bo_ref,
                o_ref,
                k_scr, v_scr,
                *, num_heads, head_dim, q_tile):
    H, hd = num_heads, head_dim
    qi = pl.program_id(1)
    mxu = wq_ref.dtype

    # ---- K/V projection: once per batch element (first query tile), cached
    # head-major in VMEM scratch (MXU dtype) and reused by all query tiles.
    # Correct because the batch axis is the outer grid axis and qi is the inner
    # sequential ("arbitrary") axis. ----
    @pl.when(qi == 0)
    def _():
        xkv = x_ref[...]                                                   # (N, D)
        k = jnp.dot(xkv, wk_ref[...],
                    preferred_element_type=jnp.float32) + bk_ref[...]
        v = jnp.dot(xkv, wv_ref[...],
                    preferred_element_type=jnp.float32) + bv_ref[...]
        # TODO(synk): emit the projection head-major directly (would need a
        # major-dim transpose Mosaic may not lower); static lane slices are safe.
        for h in range(H):
            lo = h * hd
            k_scr[h] = k[:, lo:lo + hd].astype(k_scr.dtype)
            v_scr[h] = v[:, lo:lo + hd].astype(v_scr.dtype)

    # ---- Q projection for this query tile, sliced from the resident x block
    # (no second x input). Softmax scale is pre-folded into wq/bq. ----
    start = pl.multiple_of(qi * q_tile, q_tile)
    xq = x_ref[pl.ds(start, q_tile), :]                                    # (tq, D)
    q = jnp.dot(xq, wq_ref[...],
                preferred_element_type=jnp.float32) + bq_ref[...]          # f32
    qh = jnp.stack([q[:, h * hd:(h + 1) * hd] for h in range(H)],
                   axis=0).astype(mxu)                                     # (H, tq, hd)

    # ---- Batched-head attention: one MXU stream over all heads. ----
    kh = k_scr[...]                                                        # (H, N, hd)
    vh = v_scr[...]
    s = jnp.einsum('hqd,hkd->hqk', qh, kh,
                   preferred_element_type=jnp.float32)                     # (H, tq, N)
    m = jnp.max(s, axis=-1, keepdims=True)
    e = jnp.exp(s - m)                                                     # f32
    l = jnp.sum(e, axis=-1, keepdims=True)                                 # (H, tq, 1)
    ctx = jnp.einsum('hqk,hkd->hqd', e.astype(mxu), vh,
                     preferred_element_type=jnp.float32)                   # (H, tq, hd)
    # Deferred softmax normalization with an EXACT f32 reciprocal (the previous
    # approx=True reciprocal was the source of the reference mismatch).
    ctx = (ctx * (1.0 / l)).astype(mxu)

    # ---- Output projection: lane-concat heads (matches the (h, hd) ordering of
    # wo.T's rows), then a single full-depth-D MXU matmul. ----
    attended = jnp.concatenate([ctx[h] for h in range(H)], axis=-1)        # (tq, D)
    out = jnp.dot(attended, wo_ref[...],
                  preferred_element_type=jnp.float32) + bo_ref[...]
    o_ref[...] = out.astype(o_ref.dtype)


def multi_head_self_attention(x, params, num_heads, dot_product_norm=True,
                              q_block=256, mxu_dtype=jnp.bfloat16):
    B, N, D = x.shape
    assert D % num_heads == 0, "embed_dim must be divisible by num_heads"
    hd = D // num_heads
    out_dtype = x.dtype
    scale = 1.0 / math.sqrt(hd) if dot_product_norm else 1.0
    dt = jnp.dtype(mxu_dtype) if mxu_dtype is not None else x.dtype

    wq, bq, wk, bk, wv, bv, wo, bo = params
    # Host-side layout prep: (in, out) weights, softmax scale folded into the Q
    # projection, x cast to the MXU dtype (halves HBM traffic when bf16).
    wq_t = (wq * scale).T.astype(dt)                     # (D, D)
    wk_t = wk.T.astype(dt)
    wv_t = wv.T.astype(dt)
    wo_t = wo.T.astype(dt)                               # (D, D), rows ordered (h, hd)
    bq_s = (bq * scale).reshape(1, D).astype(jnp.float32)
    bk_r = bk.reshape(1, D).astype(jnp.float32)
    bv_r = bv.reshape(1, D).astype(jnp.float32)
    bo_r = bo.reshape(1, D).astype(jnp.float32)
    x_in = x.astype(dt) if dt != x.dtype else x

    # Largest divisor of N that fits the query block (TODO(synk): masked ragged tile).
    tq = min(q_block, N)
    while N % tq:
        tq -= 1
    n_q = N // tq

    # Grid-invariant parameters: whole-array VMEM residents (no double-buffering).
    vmem = pl.BlockSpec(memory_space=pltpu.MemorySpace.VMEM)
    x_spec = pl.BlockSpec((None, N, D), lambda b, qi: (b, 0, 0))
    out_spec = pl.BlockSpec((None, tq, D), lambda b, qi: (b, qi, 0))

    kernel = functools.partial(mhsa_kernel, num_heads=num_heads,
                               head_dim=hd, q_tile=tq)

    return pl.pallas_call(
        kernel,
        out_shape=jax.ShapeDtypeStruct((B, N, D), out_dtype),
        grid_spec=pltpu.PrefetchScalarGridSpec(
            num_scalar_prefetch=0,
            grid=(B, n_q),
            in_specs=[x_spec,
                      vmem, vmem,    # wq, bq (scale folded)
                      vmem, vmem,    # wk, bk
                      vmem, vmem,    # wv, bv
                      vmem, vmem],   # wo, bo
            out_specs=out_spec,
            scratch_shapes=[pltpu.VMEM((num_heads, N, hd), dt),
                            pltpu.VMEM((num_heads, N, hd), dt)],
        ),
        compiler_params=pltpu.CompilerParams(
            dimension_semantics=("parallel", "arbitrary"),
            # <= physical on v7x (64 MiB); can be raised toward ~100 MiB on v5e/v6e.
            vmem_limit_bytes=64 * 1024 * 1024),
    )(x_in, wq_t, bq_s, wk_t, bk_r, wv_t, bv_r, wo_t, bo_r)


def reference_mhsa(x, params, num_heads, dot_product_norm=True):
    B, N, D = x.shape
    hd = D // num_heads
    wq, bq, wk, bk, wv, bv, wo, bo = params
    q = x @ wq.T + bq
    k = x @ wk.T + bk
    v = x @ wv.T + bv
    q = q.reshape(B, N, num_heads, hd).transpose(0, 2, 1, 3)
    k = k.reshape(B, N, num_heads, hd).transpose(0, 2, 1, 3)
    v = v.reshape(B, N, num_heads, hd).transpose(0, 2, 1, 3)
    scores = q @ jnp.swapaxes(k, -2, -1)
    if dot_product_norm:
        scores = scores / math.sqrt(hd)
    attn = jax.nn.softmax(scores, axis=-1)
    attended = attn @ v
    attended = attended.transpose(0, 2, 1, 3).reshape(B, N, D)
    return attended @ wo.T + bo


if __name__ == "__main__":
    B, N, D = 2, 8, 32
    num_heads = 4

    key = jax.random.PRNGKey(0)
    keys = jax.random.split(key, 9)
    x = jax.random.normal(keys[0], (B, N, D), dtype=jnp.float32)

    def init_w(k):
        return jax.random.normal(k, (D, D), dtype=jnp.float32) / math.sqrt(D)

    def init_b(k):
        return jax.random.normal(k, (D,), dtype=jnp.float32) * 0.01

    params = (init_w(keys[1]), init_b(keys[2]),
              init_w(keys[3]), init_b(keys[4]),
              init_w(keys[5]), init_b(keys[6]),
              init_w(keys[7]), init_b(keys[8]))

    ref = reference_mhsa(x, params, num_heads)

    # Exact-dtype path (f32 MXU): tight correctness check.
    out_f32 = jax.block_until_ready(
        multi_head_self_attention(x, params, num_heads, mxu_dtype=jnp.float32))
    assert out_f32.shape == (B, N, D)
    assert jnp.allclose(out_f32, ref, atol=1e-3, rtol=1e-3), "f32 kernel mismatch"

    # Performance-default path (bf16 MXU inputs, f32 accumulation / softmax):
    # loose tolerance reflects bf16 input/intermediate rounding.
    out_bf16 = jax.block_until_ready(
        multi_head_self_attention(x, params, num_heads))
    assert out_bf16.shape == (B, N, D)
    assert jnp.allclose(out_bf16, ref, atol=1e-1, rtol=1e-1), "bf16 kernel mismatch"

    print("KERNEL_OK")
</pallas_src>

<mosaic_0001>
module attributes {stable_mosaic.version = 11 : i64} {
  func.func @mhsa_kernel(%arg0: i32, %arg1: i32, %arg2: memref<1x8x32xf32, #tpu.memory_space<vmem>>, %arg3: memref<32x32xf32, #tpu.memory_space<vmem>>, %arg4: memref<1x32xf32, #tpu.memory_space<vmem>>, %arg5: memref<32x32xf32, #tpu.memory_space<vmem>>, %arg6: memref<1x32xf32, #tpu.memory_space<vmem>>, %arg7: memref<32x32xf32, #tpu.memory_space<vmem>>, %arg8: memref<1x32xf32, #tpu.memory_space<vmem>>, %arg9: memref<32x32xf32, #tpu.memory_space<vmem>>, %arg10: memref<1x32xf32, #tpu.memory_space<vmem>>, %arg11: memref<1x8x32xf32, #tpu.memory_space<vmem>>, %arg12: memref<4x8x8xf32, #tpu.memory_space<vmem>>, %arg13: memref<4x8x8xf32, #tpu.memory_space<vmem>>) attributes {dimension_semantics = [#tpu.dimension_semantics<parallel>, #tpu.dimension_semantics<arbitrary>], iteration_bounds = array<i64: 2, 1>, scalar_prefetch = 0 : i64, scratch_operands = 2 : i64, tpu.core_type = #tpu.core_type<tc>, window_params = [{transform_indices = @transform_0, window_bounds = array<i64: 1, 8, 32>}, {pipeline_mode = #tpu.pipeline_mode<synchronous>, transform_indices = @transform_1, window_bounds = array<i64: 32, 32>}, {pipeline_mode = #tpu.pipeline_mode<synchronous>, transform_indices = @transform_2, window_bounds = array<i64: 1, 32>}, {pipeline_mode = #tpu.pipeline_mode<synchronous>, transform_indices = @transform_3, window_bounds = array<i64: 32, 32>}, {pipeline_mode = #tpu.pipeline_mode<synchronous>, transform_indices = @transform_4, window_bounds = array<i64: 1, 32>}, {pipeline_mode = #tpu.pipeline_mode<synchronous>, transform_indices = @transform_5, window_bounds = array<i64: 32, 32>}, {pipeline_mode = #tpu.pipeline_mode<synchronous>, transform_indices = @transform_6, window_bounds = array<i64: 1, 32>}, {pipeline_mode = #tpu.pipeline_mode<synchronous>, transform_indices = @transform_7, window_bounds = array<i64: 32, 32>}, {pipeline_mode = #tpu.pipeline_mode<synchronous>, transform_indices = @transform_8, window_bounds = array<i64: 1, 32>}, {transform_indices = @transform_9, window_bounds = array<i64: 1, 8, 32>}]} {
    %c0_i32 = arith.constant 0 : i32
    %0 = arith.cmpi eq, %arg1, %c0_i32 : i32
    %1 = arith.extui %0 : i1 to i32
    %c0_i32_0 = arith.constant 0 : i32
    %2 = arith.cmpi ne, %1, %c0_i32_0 : i32
    scf.if %2 {
      %c0_25 = arith.constant 0 : index
      %c0_26 = arith.constant 0 : index
      %c0_27 = arith.constant 0 : index
      %54 = vector.load %arg2[%c0_25, %c0_26, %c0_27] : memref<1x8x32xf32, #tpu.memory_space<vmem>>, vector<1x8x32xf32>
      %55 = vector.shape_cast %54 : vector<1x8x32xf32> to vector<8x32xf32>
      %c0_28 = arith.constant 0 : index
      %c0_29 = arith.constant 0 : index
      %56 = vector.load %arg5[%c0_28, %c0_29] : memref<32x32xf32, #tpu.memory_space<vmem>>, vector<32x32xf32>
      %cst_30 = arith.constant dense<0.000000e+00> : vector<8x32xf32>
      %57 = tpu.matmul %55, %56, %cst_30 {dimension_numbers = #tpu.dot_dimension_numbers<[1], [0], [0], [1], [0, 0, 1, 1], [], []>} : vector<8x32xf32>, vector<32x32xf32>, vector<8x32xf32> -> vector<8x32xf32>
      %c0_31 = arith.constant 0 : index
      %c0_32 = arith.constant 0 : index
      %58 = vector.load %arg6[%c0_31, %c0_32] : memref<1x32xf32, #tpu.memory_space<vmem>>, vector<1x32xf32>
      %59 = vector.broadcast %58 : vector<1x32xf32> to vector<8x32xf32>
      %60 = arith.addf %57, %59 : vector<8x32xf32>
      %c0_33 = arith.constant 0 : index
      %c0_34 = arith.constant 0 : index
      %61 = vector.load %arg7[%c0_33, %c0_34] : memref<32x32xf32, #tpu.memory_space<vmem>>, vector<32x32xf32>
      %cst_35 = arith.constant dense<0.000000e+00> : vector<8x32xf32>
      %62 = tpu.matmul %55, %61, %cst_35 {dimension_numbers = #tpu.dot_dimension_numbers<[1], [0], [0], [1], [0, 0, 1, 1], [], []>} : vector<8x32xf32>, vector<32x32xf32>, vector<8x32xf32> -> vector<8x32xf32>
      %c0_36 = arith.constant 0 : index
      %c0_37 = arith.constant 0 : index
      %63 = vector.load %arg8[%c0_36, %c0_37] : memref<1x32xf32, #tpu.memory_space<vmem>>, vector<1x32xf32>
      %64 = vector.broadcast %63 : vector<1x32xf32> to vector<8x32xf32>
      %65 = arith.addf %62, %64 : vector<8x32xf32>
      %66 = vector.extract_strided_slice %60 {offsets = [0, 0], sizes = [8, 8], strides = [1, 1]} : vector<8x32xf32> to vector<8x8xf32>
      %c0_38 = arith.constant 0 : index
      %c0_39 = arith.constant 0 : index
      %c0_40 = arith.constant 0 : index
      %67 = vector.load %arg12[%c0_38, %c0_39, %c0_40] : memref<4x8x8xf32, #tpu.memory_space<vmem>>, vector<1x8x8xf32>
      %68 = vector.shape_cast %67 : vector<1x8x8xf32> to vector<8x8xf32>
      %69 = vector.shape_cast %66 : vector<8x8xf32> to vector<1x8x8xf32>
      tpu.vector_store %arg12[%c0_38, %c0_39, %c0_40], %69 {strides = array<i32>} : memref<4x8x8xf32, #tpu.memory_space<vmem>>, vector<1x8x8xf32>,
      %70 = vector.extract_strided_slice %65 {offsets = [0, 0], sizes = [8, 8], strides = [1, 1]} : vector<8x32xf32> to vector<8x8xf32>
      %c0_41 = arith.constant 0 : index
      %c0_42 = arith.constant 0 : index
      %c0_43 = arith.constant 0 : index
      %71 = vector.load %arg13[%c0_41, %c0_42, %c0_43] : memref<4x8x8xf32, #tpu.memory_space<vmem>>, vector<1x8x8xf32>
      %72 = vector.shape_cast %71 : vector<1x8x8xf32> to vector<8x8xf32>
      %73 = vector.shape_cast %70 : vector<8x8xf32> to vector<1x8x8xf32>
      tpu.vector_store %arg13[%c0_41, %c0_42, %c0_43], %73 {strides = array<i32>} : memref<4x8x8xf32, #tpu.memory_space<vmem>>, vector<1x8x8xf32>,
      %74 = vector.extract_strided_slice %60 {offsets = [0, 8], sizes = [8, 8], strides = [1, 1]} : vector<8x32xf32> to vector<8x8xf32>
      %c1 = arith.constant 1 : index
      %c0_44 = arith.constant 0 : index
      %c0_45 = arith.constant 0 : index
      %75 = vector.load %arg12[%c1, %c0_44, %c0_45] : memref<4x8x8xf32, #tpu.memory_space<vmem>>, vector<1x8x8xf32>
      %76 = vector.shape_cast %75 : vector<1x8x8xf32> to vector<8x8xf32>
      %77 = vector.shape_cast %74 : vector<8x8xf32> to vector<1x8x8xf32>
      tpu.vector_store %arg12[%c1, %c0_44, %c0_45], %77 {strides = array<i32>} : memref<4x8x8xf32, #tpu.memory_space<vmem>>, vector<1x8x8xf32>,
      %78 = vector.extract_strided_slice %65 {offsets = [0, 8], sizes = [8, 8], strides = [1, 1]} : vector<8x32xf32> to vector<8x8xf32>
      %c1_46 = arith.constant 1 : index
      %c0_47 = arith.constant 0 : index
      %c0_48 = arith.constant 0 : index
      %79 = vector.load %arg13[%c1_46, %c0_47, %c0_48] : memref<4x8x8xf32, #tpu.memory_space<vmem>>, vector<1x8x8xf32>
      %80 = vector.shape_cast %79 : vector<1x8x8xf32> to vector<8x8xf32>
      %81 = vector.shape_cast %78 : vector<8x8xf32> to vector<1x8x8xf32>
      tpu.vector_store %arg13[%c1_46, %c0_47, %c0_48], %81 {strides = array<i32>} : memref<4x8x8xf32, #tpu.memory_space<vmem>>, vector<1x8x8xf32>,
      %82 = vector.extract_strided_slice %60 {offsets = [0, 16], sizes = [8, 8], strides = [1, 1]} : vector<8x32xf32> to vector<8x8xf32>
      %c2 = arith.constant 2 : index
      %c0_49 = arith.constant 0 : index
      %c0_50 = arith.constant 0 : index
      %83 = vector.load %arg12[%c2, %c0_49, %c0_50] : memref<4x8x8xf32, #tpu.memory_space<vmem>>, vector<1x8x8xf32>
      %84 = vector.shape_cast %83 : vector<1x8x8xf32> to vector<8x8xf32>
      %85 = vector.shape_cast %82 : vector<8x8xf32> to vector<1x8x8xf32>
      tpu.vector_store %arg12[%c2, %c0_49, %c0_50], %85 {strides = array<i32>} : memref<4x8x8xf32, #tpu.memory_space<vmem>>, vector<1x8x8xf32>,
      %86 = vector.extract_strided_slice %65 {offsets = [0, 16], sizes = [8, 8], strides = [1, 1]} : vector<8x32xf32> to vector<8x8xf32>
      %c2_51 = arith.constant 2 : index
      %c0_52 = arith.constant 0 : index
      %c0_53 = arith.constant 0 : index
      %87 = vector.load %arg13[%c2_51, %c0_52, %c0_53] : memref<4x8x8xf32, #tpu.memory_space<vmem>>, vector<1x8x8xf32>
      %88 = vector.shape_cast %87 : vector<1x8x8xf32> to vector<8x8xf32>
      %89 = vector.shape_cast %86 : vector<8x8xf32> to vector<1x8x8xf32>
      tpu.vector_store %arg13[%c2_51, %c0_52, %c0_53], %89 {strides = array<i32>} : memref<4x8x8xf32, #tpu.memory_space<vmem>>, vector<1x8x8xf32>,
      %90 = vector.extract_strided_slice %60 {offsets = [0, 24], sizes = [8, 8], strides = [1, 1]} : vector<8x32xf32> to vector<8x8xf32>
      %c3 = arith.constant 3 : index
      %c0_54 = arith.constant 0 : index
      %c0_55 = arith.constant 0 : index
      %91 = vector.load %arg12[%c3, %c0_54, %c0_55] : memref<4x8x8xf32, #tpu.memory_space<vmem>>, vector<1x8x8xf32>
      %92 = vector.shape_cast %91 : vector<1x8x8xf32> to vector<8x8xf32>
      %93 = vector.shape_cast %90 : vector<8x8xf32> to vector<1x8x8xf32>
      tpu.vector_store %arg12[%c3, %c0_54, %c0_55], %93 {strides = array<i32>} : memref<4x8x8xf32, #tpu.memory_space<vmem>>, vector<1x8x8xf32>,
      %94 = vector.extract_strided_slice %65 {offsets = [0, 24], sizes = [8, 8], strides = [1, 1]} : vector<8x32xf32> to vector<8x8xf32>
      %c3_56 = arith.constant 3 : index
      %c0_57 = arith.constant 0 : index
      %c0_58 = arith.constant 0 : index
      %95 = vector.load %arg13[%c3_56, %c0_57, %c0_58] : memref<4x8x8xf32, #tpu.memory_space<vmem>>, vector<1x8x8xf32>
      %96 = vector.shape_cast %95 : vector<1x8x8xf32> to vector<8x8xf32>
      %97 = vector.shape_cast %94 : vector<8x8xf32> to vector<1x8x8xf32>
      tpu.vector_store %arg13[%c3_56, %c0_57, %c0_58], %97 {strides = array<i32>} : memref<4x8x8xf32, #tpu.memory_space<vmem>>, vector<1x8x8xf32>,
    } else {
    }
    %c8_i32 = arith.constant 8 : i32
    %3 = arith.muli %arg1, %c8_i32 : i32
    %4 = tpu.assume_multiple %3, 8 : i32
    %c0 = arith.constant 0 : index
    %5 = arith.index_cast %4 : i32 to index
    %c0_1 = arith.constant 0 : index
    %6 = vector.load %arg2[%c0, %5, %c0_1] : memref<1x8x32xf32, #tpu.memory_space<vmem>>, vector<1x8x32xf32>
    %7 = vector.shape_cast %6 : vector<1x8x32xf32> to vector<8x32xf32>
    %c0_2 = arith.constant 0 : index
    %c0_3 = arith.constant 0 : index
    %8 = vector.load %arg3[%c0_2, %c0_3] : memref<32x32xf32, #tpu.memory_space<vmem>>, vector<32x32xf32>
    %cst = arith.constant dense<0.000000e+00> : vector<8x32xf32>
    %9 = tpu.matmul %7, %8, %cst {dimension_numbers = #tpu.dot_dimension_numbers<[1], [0], [0], [1], [0, 0, 1, 1], [], []>} : vector<8x32xf32>, vector<32x32xf32>, vector<8x32xf32> -> vector<8x32xf32>
    %c0_4 = arith.constant 0 : index
    %c0_5 = arith.constant 0 : index
    %10 = vector.load %arg4[%c0_4, %c0_5] : memref<1x32xf32, #tpu.memory_space<vmem>>, vector<1x32xf32>
    %11 = vector.broadcast %10 : vector<1x32xf32> to vector<8x32xf32>
    %12 = arith.addf %9, %11 : vector<8x32xf32>
    %13 = vector.extract_strided_slice %12 {offsets = [0, 0], sizes = [8, 8], strides = [1, 1]} : vector<8x32xf32> to vector<8x8xf32>
    %14 = vector.extract_strided_slice %12 {offsets = [0, 8], sizes = [8, 8], strides = [1, 1]} : vector<8x32xf32> to vector<8x8xf32>
    %15 = vector.extract_strided_slice %12 {offsets = [0, 16], sizes = [8, 8], strides = [1, 1]} : vector<8x32xf32> to vector<8x8xf32>
    %16 = vector.extract_strided_slice %12 {offsets = [0, 24], sizes = [8, 8], strides = [1, 1]} : vector<8x32xf32> to vector<8x8xf32>
    %17 = vector.shape_cast %13 : vector<8x8xf32> to vector<1x8x8xf32>
    %18 = vector.shape_cast %14 : vector<8x8xf32> to vector<1x8x8xf32>
    %19 = vector.shape_cast %15 : vector<8x8xf32> to vector<1x8x8xf32>
    %20 = vector.shape_cast %16 : vector<8x8xf32> to vector<1x8x8xf32>
    %21 = tpu.concatenate %17, %18, %19, %20 in 0 : vector<1x8x8xf32>, vector<1x8x8xf32>, vector<1x8x8xf32>, vector<1x8x8xf32> -> vector<4x8x8xf32>
    %c0_6 = arith.constant 0 : index
    %c0_7 = arith.constant 0 : index
    %c0_8 = arith.constant 0 : index
    %22 = vector.load %arg12[%c0_6, %c0_7, %c0_8] : memref<4x8x8xf32, #tpu.memory_space<vmem>>, vector<4x8x8xf32>
    %c0_9 = arith.constant 0 : index
    %c0_10 = arith.constant 0 : index
    %c0_11 = arith.constant 0 : index
    %23 = vector.load %arg13[%c0_9, %c0_10, %c0_11] : memref<4x8x8xf32, #tpu.memory_space<vmem>>, vector<4x8x8xf32>
    "tpu.trace_start"() <{level = 10 : i32, message = "hqd,hkd->hqk"}> : () -> ()
    %cst_12 = arith.constant dense<0.000000e+00> : vector<4x8x8xf32>
    %24 = tpu.matmul %21, %22, %cst_12 {dimension_numbers = #tpu.dot_dimension_numbers<[2], [2], [1], [1], [0, 0, 0, 1, 1, 1], [0], [0]>} : vector<4x8x8xf32>, vector<4x8x8xf32>, vector<4x8x8xf32> -> vector<4x8x8xf32>
    "tpu.trace_stop"() : () -> ()
    %cst_13 = arith.constant dense<0xFF800000> : vector<4x8xf32>
    %25 = vector.multi_reduction <maximumf>, %24, %cst_13 [2] : vector<4x8x8xf32> to vector<4x8xf32>
    %26 = vector.shape_cast %25 : vector<4x8xf32> to vector<4x8x1xf32>
    %27 = vector.broadcast %26 : vector<4x8x1xf32> to vector<4x8x8xf32>
    %28 = arith.subf %24, %27 : vector<4x8x8xf32>
    %29 = math.exp %28 : vector<4x8x8xf32>
    %cst_14 = arith.constant dense<0.000000e+00> : vector<4x8xf32>
    %30 = vector.multi_reduction <add>, %29, %cst_14 [2] : vector<4x8x8xf32> to vector<4x8xf32>
    %31 = vector.shape_cast %30 : vector<4x8xf32> to vector<4x8x1xf32>
    "tpu.trace_start"() <{level = 10 : i32, message = "hqk,hkd->hqd"}> : () -> ()
    %cst_15 = arith.constant dense<0.000000e+00> : vector<4x8x8xf32>
    %32 = tpu.matmul %29, %23, %cst_15 {dimension_numbers = #tpu.dot_dimension_numbers<[2], [1], [1], [2], [0, 0, 0, 1, 1, 2], [0], [0]>} : vector<4x8x8xf32>, vector<4x8x8xf32>, vector<4x8x8xf32> -> vector<4x8x8xf32>
    "tpu.trace_stop"() : () -> ()
    %cst_16 = arith.constant 1.000000e+00 : f32
    %33 = vector.broadcast %cst_16 : f32 to vector<4x8x1xf32>
    %34 = arith.divf %33, %31 : vector<4x8x1xf32>
    %35 = vector.broadcast %34 : vector<4x8x1xf32> to vector<4x8x8xf32>
    %36 = arith.mulf %32, %35 : vector<4x8x8xf32>
    %37 = vector.extract_strided_slice %36 {offsets = [0, 0, 0], sizes = [1, 8, 8], strides = [1, 1, 1]} : vector<4x8x8xf32> to vector<1x8x8xf32>
    %38 = vector.shape_cast %37 : vector<1x8x8xf32> to vector<8x8xf32>
    %39 = vector.extract_strided_slice %36 {offsets = [1, 0, 0], sizes = [1, 8, 8], strides = [1, 1, 1]} : vector<4x8x8xf32> to vector<1x8x8xf32>
    %40 = vector.shape_cast %39 : vector<1x8x8xf32> to vector<8x8xf32>
    %41 = vector.extract_strided_slice %36 {offsets = [2, 0, 0], sizes = [1, 8, 8], strides = [1, 1, 1]} : vector<4x8x8xf32> to vector<1x8x8xf32>
    %42 = vector.shape_cast %41 : vector<1x8x8xf32> to vector<8x8xf32>
    %43 = vector.extract_strided_slice %36 {offsets = [3, 0, 0], sizes = [1, 8, 8], strides = [1, 1, 1]} : vector<4x8x8xf32> to vector<1x8x8xf32>
    %44 = vector.shape_cast %43 : vector<1x8x8xf32> to vector<8x8xf32>
    %45 = tpu.concatenate %38, %40, %42, %44 in 1 : vector<8x8xf32>, vector<8x8xf32>, vector<8x8xf32>, vector<8x8xf32> -> vector<8x32xf32>
    %c0_17 = arith.constant 0 : index
    %c0_18 = arith.constant 0 : index
    %46 = vector.load %arg9[%c0_17, %c0_18] : memref<32x32xf32, #tpu.memory_space<vmem>>, vector<32x32xf32>
    %cst_19 = arith.constant dense<0.000000e+00> : vector<8x32xf32>
    %47 = tpu.matmul %45, %46, %cst_19 {dimension_numbers = #tpu.dot_dimension_numbers<[1], [0], [0], [1], [0, 0, 1, 1], [], []>} : vector<8x32xf32>, vector<32x32xf32>, vector<8x32xf32> -> vector<8x32xf32>
    %c0_20 = arith.constant 0 : index
    %c0_21 = arith.constant 0 : index
    %48 = vector.load %arg10[%c0_20, %c0_21] : memref<1x32xf32, #tpu.memory_space<vmem>>, vector<1x32xf32>
    %49 = vector.broadcast %48 : vector<1x32xf32> to vector<8x32xf32>
    %50 = arith.addf %47, %49 : vector<8x32xf32>
    %c0_22 = arith.constant 0 : index
    %c0_23 = arith.constant 0 : index
    %c0_24 = arith.constant 0 : index
    %51 = vector.load %arg11[%c0_22, %c0_23, %c0_24] : memref<1x8x32xf32, #tpu.memory_space<vmem>>, vector<1x8x32xf32>
    %52 = vector.shape_cast %51 : vector<1x8x32xf32> to vector<8x32xf32>
    %53 = vector.shape_cast %50 : vector<8x32xf32> to vector<1x8x32xf32>
    tpu.vector_store %arg11[%c0_22, %c0_23, %c0_24], %53 {strides = array<i32>} : memref<1x8x32xf32, #tpu.memory_space<vmem>>, vector<1x8x32xf32>,
    return
  }
  func.func @transform_0(%arg0: i32, %arg1: i32) -> (i32, i32, i32) {
    %c0_i32 = arith.constant 0 : i32
    %c0_i32_0 = arith.constant 0 : i32
    %c0_i32_1 = arith.constant 0 : i32
    return %arg0, %c0_i32, %c0_i32_0 : i32, i32, i32
  }
  func.func @transform_1(%arg0: i32, %arg1: i32) -> (i32, i32) {
    %c0_i32 = arith.constant 0 : i32
    %c0_i32_0 = arith.constant 0 : i32
    %c0_i32_1 = arith.constant 0 : i32
    return %c0_i32, %c0_i32_0 : i32, i32
  }
  func.func @transform_2(%arg0: i32, %arg1: i32) -> (i32, i32) {
    %c0_i32 = arith.constant 0 : i32
    %c0_i32_0 = arith.constant 0 : i32
    %c0_i32_1 = arith.constant 0 : i32
    return %c0_i32, %c0_i32_0 : i32, i32
  }
  func.func @transform_3(%arg0: i32, %arg1: i32) -> (i32, i32) {
    %c0_i32 = arith.constant 0 : i32
    %c0_i32_0 = arith.constant 0 : i32
    %c0_i32_1 = arith.constant 0 : i32
    return %c0_i32, %c0_i32_0 : i32, i32
  }
  func.func @transform_4(%arg0: i32, %arg1: i32) -> (i32, i32) {
    %c0_i32 = arith.constant 0 : i32
    %c0_i32_0 = arith.constant 0 : i32
    %c0_i32_1 = arith.constant 0 : i32
    return %c0_i32, %c0_i32_0 : i32, i32
  }
  func.func @transform_5(%arg0: i32, %arg1: i32) -> (i32, i32) {
    %c0_i32 = arith.constant 0 : i32
    %c0_i32_0 = arith.constant 0 : i32
    %c0_i32_1 = arith.constant 0 : i32
    return %c0_i32, %c0_i32_0 : i32, i32
  }
  func.func @transform_6(%arg0: i32, %arg1: i32) -> (i32, i32) {
    %c0_i32 = arith.constant 0 : i32
    %c0_i32_0 = arith.constant 0 : i32
    %c0_i32_1 = arith.constant 0 : i32
    return %c0_i32, %c0_i32_0 : i32, i32
  }
  func.func @transform_7(%arg0: i32, %arg1: i32) -> (i32, i32) {
    %c0_i32 = arith.constant 0 : i32
    %c0_i32_0 = arith.constant 0 : i32
    %c0_i32_1 = arith.constant 0 : i32
    return %c0_i32, %c0_i32_0 : i32, i32
  }
  func.func @transform_8(%arg0: i32, %arg1: i32) -> (i32, i32) {
    %c0_i32 = arith.constant 0 : i32
    %c0_i32_0 = arith.constant 0 : i32
    %c0_i32_1 = arith.constant 0 : i32
    return %c0_i32, %c0_i32_0 : i32, i32
  }
  func.func @transform_9(%arg0: i32, %arg1: i32) -> (i32, i32, i32) {
    %c0_i32 = arith.constant 0 : i32
    %c0_i32_0 = arith.constant 0 : i32
    return %arg0, %arg1, %c0_i32 : i32, i32, i32
  }
}

</mosaic_0001>

<llo_original>
// kernel: tpu_custom_call.1
$region0: #{tpu_custom_call.1}
  #allocation0 [shape = 'u32[]', space=smem, size = 0x4, offset = 0x4, fixed_abs, tag = 'smem constant byte address 0x4 - core index']
  #allocation1 [shape = 'u32[144,128]{1,0:T(1,128)}', space=vmem, size = 0x12000, scoped, tag = 'internal scratch']
  #allocation2 [shape = 'f32[4,8,8]{2,1,0:T(8,128)}', space=vmem, size = 0x4000, scoped, tag = 'scratch operand']
  #allocation3 [shape = 'f32[4,8,8]{2,1,0:T(8,128)}', space=vmem, size = 0x4000, scoped, tag = 'scratch operand']
  %s0 = inlined_call_operand.hbm [shape: f32[2,8,32], index: 0, kind: input, shape index: {}]
  %s1 = inlined_call_operand.hbm [shape: f32[32,32], index: 1, kind: input, shape index: {}]
  %s2 = inlined_call_operand.vmem [shape: f32[1,32], index: 2, kind: input, shape index: {}]
  %s3 = inlined_call_operand.hbm [shape: f32[32,32], index: 3, kind: input, shape index: {}]
  %s4 = inlined_call_operand.vmem [shape: f32[1,32], index: 4, kind: input, shape index: {}]
  %s5 = inlined_call_operand.hbm [shape: f32[32,32], index: 5, kind: input, shape index: {}]
  %s6 = inlined_call_operand.vmem [shape: f32[1,32], index: 6, kind: input, shape index: {}]
  %s7 = inlined_call_operand.hbm [shape: f32[32,32], index: 7, kind: input, shape index: {}]
  %s8 = inlined_call_operand.vmem [shape: f32[1,32], index: 8, kind: input, shape index: {}]
  %s9 = inlined_call_operand.hbm [shape: f32[2,8,32], index: 9, kind: output, shape index: {}]
  %s10 = sld [smem:[#allocation0]]
  $region93: #{tpu_custom_call.1} parent=0
    _
  %s12 = ssub.s32 1, %s10
  %s13 = scalar_select 0, %s12, %s10
  $region1: #{tpu_custom_call.1} parent=0
    #allocation4 [shape = 'u8[8192]{0}', space=vmem, size = 0x2000, scoped, tag = 'input window, operand 0']
    #allocation5 [shape = 's32[2]{0}', space=sflag, size = 0x8, scoped, tag = 'scoped memory for tpu_custom_call.1']
    #allocation6 [shape = 's32[2]{0}', space=sflag, size = 0x8, scoped, tag = 'scoped memory for tpu_custom_call.1']
    #allocation7 [shape = 'u8[16384]{0}', space=vmem, size = 0x4000, scoped, tag = 'input window, operand 1, single buffered']
    #allocation8 [shape = 's32[1]{0}', space=sflag, size = 0x4, scoped, tag = 'scoped memory for tpu_custom_call.1']
    #allocation9 [shape = 'u8[16384]{0}', space=vmem, size = 0x4000, scoped, tag = 'input window, operand 3, single buffered']
    #allocation10 [shape = 'u8[16384]{0}', space=vmem, size = 0x4000, scoped, tag = 'input window, operand 5, single buffered']
    #allocation11 [shape = 's32[1]{0}', space=sflag, size = 0x4, scoped, tag = 'scoped memory for tpu_custom_call.1']
    #allocation12 [shape = 'u8[16384]{0}', space=vmem, size = 0x4000, scoped, tag = 'input window, operand 7, single buffered']
    #allocation13 [shape = 'u8[8192]{0}', space=vmem, size = 0x2000, scoped, tag = 'output window, operand 0']
    %14 = vsyncpa [#allocation5], 0
    %s15 = scalar_lea.sflag [#allocation5], 1
    %16 = vsyncpa %s15, 0
    %17 = vsyncpa [#allocation8], 0
    %18 = vsyncpa [#allocation11], 0
    %19 = vsyncpa [#allocation6], 0
    %s20 = scalar_lea.sflag [#allocation6], 1
    %21 = vsyncpa %s20, 0
    loop: start=0, step=1, limit=4
    $region2: #{tpu_custom_call.1} parent=1 // loop_pre_header
      _
    $region3: #{tpu_custom_call.1} parent=1 // loop_header
      %s23 = sphi 0, %s27
      %p24 = scmp.ge.s32.totalorder %s23, 4
      %s30 = sphi 0, %s42
      %s31 = sphi 0, %s38
      %s32 = sphi 0, %s30
      %s33 = sphi 0, %s31
      %s34 = sphi 0, %s32
      %s35 = sphi 0, %s33
      %s45 = sphi 0, %s47
      %s48 = sphi 0, %s45
      %s49 = sphi 0, %s48
      %s65 = sphi 0, %s49
      %s69 = sphi 0, %s69
      %s71 = sphi 0, %s69
      %s72 = sphi 0, %s71
      %s86 = sphi 0, %s72
      %s90 = sphi 0, %s90
      %s92 = sphi 0, %s90
      %s93 = sphi 0, %s92
      %s107 = sphi 0, %s93
      %s111 = sphi 0, %s111
      %s113 = sphi 0, %s111
      %s114 = sphi 0, %s113
      %s128 = sphi 0, %s114
      %s132 = sphi 0, %s132
      %s134 = sphi 0, %s132
      %s135 = sphi 0, %s134
      %s149 = sphi 0, %s135
      %s153 = sphi 0, %s153
      %s155 = sphi 0, %s153
      %s156 = sphi 0, %s155
      %s170 = sphi 0, %s156
      %s174 = sphi 0, %s174
      %s176 = sphi 0, %s174
      %s177 = sphi 0, %s176
      %s191 = sphi 0, %s177
      %s195 = sphi 0, %s195
      %s197 = sphi 0, %s195
      %s198 = sphi 0, %s197
      %s212 = sphi 0, %s198
      %s216 = sphi 0, %s216
      %s218 = sphi 0, %s216
      %s219 = sphi 0, %s218
      %s233 = sphi 0, %s219
      %s241 = sphi 0, %s243
      %s244 = sphi 0, %s241
      %s245 = sphi 0, %s244
      %s261 = sphi 0, %s245
    $region4: #{tpu_custom_call.1} parent=1 // loop_header_branch
      %26 = sbr.rel (%p24) target = $region8
    $region5: #{tpu_custom_call.1} parent=1 // loop_body
      %s28 = ssub.s32 %s23, 1
      %s29 = ssub.s32 %s23, 2
      %s36 = sadd.s32 1, %s31
      %p37 = scmp.ge.s32.totalorder %s36, 1
      %s38 = scalar_select %p37, 0, %s36
      %s39 = sadd.s32 1, %s30
      %s40 = scalar_select %p37, %s39, %s30
      %p41 = scmp.ge.s32.totalorder %s40, 2
      %s42 = scalar_select %p41, 0, %s40
      %s43 = ssub.s32 %s30, %s42
      %p44 = scmp.eq.s32.totalorder %s43, 0
      %s46 = sadd.s32 %s45, 1
      %s47 = scalar_select %p44, %s45, %s46
      %p50 = pneg %p44
      %p51 = scmp.eq.s32.totalorder %s23, 1
      %p52 = por %p50, %p51
      %p53 = scmp.ne.s32.totalorder %s45, %s48
      %p54 = scmp.eq.s32.totalorder %s23, 0
      %p55 = por %p53, %p54
      %p56 = scmp.ne.s32.totalorder %s45, %s48
      %p57 = scmp.eq.s32.totalorder %s28, 1
      %p58 = por %p56, %p57
      %p59 = scmp.ne.s32.totalorder %s48, %s49
      %p60 = scmp.eq.s32.totalorder %s28, 0
      %p61 = por %p59, %p60
      %p62 = scmp.ne.s32.totalorder %s48, %s49
      %p63 = scmp.eq.s32.totalorder %s29, 1
      %p64 = por %p62, %p63
      %p66 = scmp.ne.s32.totalorder %s49, %s65
      %p67 = scmp.eq.s32.totalorder %s29, 0
      %p68 = por %p66, %p67
      %s70 = sadd.s32 %s69, 1
      %p73 = scmp.eq.s32.totalorder %s23, 1
      %p74 = scmp.ne.s32.totalorder %s69, %s71
      %p75 = scmp.eq.s32.totalorder %s23, 0
      %p76 = por %p74, %p75
      %p77 = scmp.ne.s32.totalorder %s69, %s71
      %p78 = scmp.eq.s32.totalorder %s28, 1
      %p79 = por %p77, %p78
      %p80 = scmp.ne.s32.totalorder %s71, %s72
      %p81 = scmp.eq.s32.totalorder %s28, 0
      %p82 = por %p80, %p81
      %p83 = scmp.ne.s32.totalorder %s71, %s72
      %p84 = scmp.eq.s32.totalorder %s29, 1
      %p85 = por %p83, %p84
      %p87 = scmp.ne.s32.totalorder %s72, %s86
      %p88 = scmp.eq.s32.totalorder %s29, 0
      %p89 = por %p87, %p88
      %s91 = sadd.s32 %s90, 1
      %p94 = scmp.eq.s32.totalorder %s23, 1
      %p95 = scmp.ne.s32.totalorder %s90, %s92
      %p96 = scmp.eq.s32.totalorder %s23, 0
      %p97 = por %p95, %p96
      %p98 = scmp.ne.s32.totalorder %s90, %s92
      %p99 = scmp.eq.s32.totalorder %s28, 1
      %p100 = por %p98, %p99
      %p101 = scmp.ne.s32.totalorder %s92, %s93
      %p102 = scmp.eq.s32.totalorder %s28, 0
      %p103 = por %p101, %p102
      %p104 = scmp.ne.s32.totalorder %s92, %s93
      %p105 = scmp.eq.s32.totalorder %s29, 1
      %p106 = por %p104, %p105
      %p108 = scmp.ne.s32.totalorder %s93, %s107
      %p109 = scmp.eq.s32.totalorder %s29, 0
      %p110 = por %p108, %p109
      %s112 = sadd.s32 %s111, 1
      %p115 = scmp.eq.s32.totalorder %s23, 1
      %p116 = scmp.ne.s32.totalorder %s111, %s113
      %p117 = scmp.eq.s32.totalorder %s23, 0
      %p118 = por %p116, %p117
      %p119 = scmp.ne.s32.totalorder %s111, %s113
      %p120 = scmp.eq.s32.totalorder %s28, 1
      %p121 = por %p119, %p120
      %p122 = scmp.ne.s32.totalorder %s113, %s114
      %p123 = scmp.eq.s32.totalorder %s28, 0
      %p124 = por %p122, %p123
      %p125 = scmp.ne.s32.totalorder %s113, %s114
      %p126 = scmp.eq.s32.totalorder %s29, 1
      %p127 = por %p125, %p126
      %p129 = scmp.ne.s32.totalorder %s114, %s128
      %p130 = scmp.eq.s32.totalorder %s29, 0
      %p131 = por %p129, %p130
      %s133 = sadd.s32 %s132, 1
      %p136 = scmp.eq.s32.totalorder %s23, 1
      %p137 = scmp.ne.s32.totalorder %s132, %s134
      %p138 = scmp.eq.s32.totalorder %s23, 0
      %p139 = por %p137, %p138
      %p140 = scmp.ne.s32.totalorder %s132, %s134
      %p141 = scmp.eq.s32.totalorder %s28, 1
      %p142 = por %p140, %p141
      %p143 = scmp.ne.s32.totalorder %s134, %s135
      %p144 = scmp.eq.s32.totalorder %s28, 0
      %p145 = por %p143, %p144
      %p146 = scmp.ne.s32.totalorder %s134, %s135
      %p147 = scmp.eq.s32.totalorder %s29, 1
      %p148 = por %p146, %p147
      %p150 = scmp.ne.s32.totalorder %s135, %s149
      %p151 = scmp.eq.s32.totalorder %s29, 0
      %p152 = por %p150, %p151
      %s154 = sadd.s32 %s153, 1
      %p157 = scmp.eq.s32.totalorder %s23, 1
      %p158 = scmp.ne.s32.totalorder %s153, %s155
      %p159 = scmp.eq.s32.totalorder %s23, 0
      %p160 = por %p158, %p159
      %p161 = scmp.ne.s32.totalorder %s153, %s155
      %p162 = scmp.eq.s32.totalorder %s28, 1
      %p163 = por %p161, %p162
      %p164 = scmp.ne.s32.totalorder %s155, %s156
      %p165 = scmp.eq.s32.totalorder %s28, 0
      %p166 = por %p164, %p165
      %p167 = scmp.ne.s32.totalorder %s155, %s156
      %p168 = scmp.eq.s32.totalorder %s29, 1
      %p169 = por %p167, %p168
      %p171 = scmp.ne.s32.totalorder %s156, %s170
      %p172 = scmp.eq.s32.totalorder %s29, 0
      %p173 = por %p171, %p172
      %s175 = sadd.s32 %s174, 1
      %p178 = scmp.eq.s32.totalorder %s23, 1
      %p179 = scmp.ne.s32.totalorder %s174, %s176
      %p180 = scmp.eq.s32.totalorder %s23, 0
      %p181 = por %p179, %p180
      %p182 = scmp.ne.s32.totalorder %s174, %s176
      %p183 = scmp.eq.s32.totalorder %s28, 1
      %p184 = por %p182, %p183
      %p185 = scmp.ne.s32.totalorder %s176, %s177
      %p186 = scmp.eq.s32.totalorder %s28, 0
      %p187 = por %p185, %p186
      %p188 = scmp.ne.s32.totalorder %s176, %s177
      %p189 = scmp.eq.s32.totalorder %s29, 1
      %p190 = por %p188, %p189
      %p192 = scmp.ne.s32.totalorder %s177, %s191
      %p193 = scmp.eq.s32.totalorder %s29, 0
      %p194 = por %p192, %p193
      %s196 = sadd.s32 %s195, 1
      %p199 = scmp.eq.s32.totalorder %s23, 1
      %p200 = scmp.ne.s32.totalorder %s195, %s197
      %p201 = scmp.eq.s32.totalorder %s23, 0
      %p202 = por %p200, %p201
      %p203 = scmp.ne.s32.totalorder %s195, %s197
      %p204 = scmp.eq.s32.totalorder %s28, 1
      %p205 = por %p203, %p204
      %p206 = scmp.ne.s32.totalorder %s197, %s198
      %p207 = scmp.eq.s32.totalorder %s28, 0
      %p208 = por %p206, %p207
      %p209 = scmp.ne.s32.totalorder %s197, %s198
      %p210 = scmp.eq.s32.totalorder %s29, 1
      %p211 = por %p209, %p210
      %p213 = scmp.ne.s32.totalorder %s198, %s212
      %p214 = scmp.eq.s32.totalorder %s29, 0
      %p215 = por %p213, %p214
      %s217 = sadd.s32 %s216, 1
      %p220 = scmp.eq.s32.totalorder %s23, 1
      %p221 = scmp.ne.s32.totalorder %s216, %s218
      %p222 = scmp.eq.s32.totalorder %s23, 0
      %p223 = por %p221, %p222
      %p224 = scmp.ne.s32.totalorder %s216, %s218
      %p225 = scmp.eq.s32.totalorder %s28, 1
      %p226 = por %p224, %p225
      %p227 = scmp.ne.s32.totalorder %s218, %s219
      %p228 = scmp.eq.s32.totalorder %s28, 0
      %p229 = por %p227, %p228
      %p230 = scmp.ne.s32.totalorder %s218, %s219
      %p231 = scmp.eq.s32.totalorder %s29, 1
      %p232 = por %p230, %p231
      %p234 = scmp.ne.s32.totalorder %s219, %s233
      %p235 = scmp.eq.s32.totalorder %s29, 0
      %p236 = por %p234, %p235
      %s237 = ssub.s32 %s30, %s42
      %s238 = ssub.s32 %s31, %s38
      %s239 = sor.u32 %s237, %s238
      %p240 = scmp.eq.s32.totalorder %s239, 0
      %s242 = sadd.s32 %s241, 1
      %s243 = scalar_select %p240, %s241, %s242
      %p246 = pneg %p240
      %p247 = scmp.eq.s32.totalorder %s23, 1
      %p248 = por %p246, %p247
      %p249 = scmp.ne.s32.totalorder %s241, %s244
      %p250 = scmp.eq.s32.totalorder %s23, 0
      %p251 = por %p249, %p250
      %p252 = scmp.ne.s32.totalorder %s241, %s244
      %p253 = scmp.eq.s32.totalorder %s28, 1
      %p254 = por %p252, %p253
      %p255 = scmp.ne.s32.totalorder %s244, %s245
      %p256 = scmp.eq.s32.totalorder %s28, 0
      %p257 = por %p255, %p256
      %p258 = scmp.ne.s32.totalorder %s244, %s245
      %p259 = scmp.eq.s32.totalorder %s29, 1
      %p260 = por %p258, %p259
      %p262 = scmp.ne.s32.totalorder %s245, %s261
      %p263 = scmp.eq.s32.totalorder %s29, 0
      %p264 = por %p262, %p263
      %p265 = scmp.le.s32.totalorder 1, %s23
      %p266 = scmp.lt.s32.totalorder %s23, 3
      %p267 = pnand %p265, %p266
      %p268 = pneg %p267
      // Predicated region
      $region9: #{tpu_custom_call.1} parent=5 // pred_check
        _
      $region10: #{tpu_custom_call.1} parent=5 // pred_check_branch
        %270 = sbr.rel (%p267) target = $region12
      $region11: #{tpu_custom_call.1} parent=5 // pred_region
        %s271 = ssub.s32 %s23, 1
        // Predicated region
        $region13: #{tpu_custom_call.1} parent=11 // pred_check
          %p272 = pneg %p82
        $region14: #{tpu_custom_call.1} parent=11 // pred_check_branch
          %274 = sbr.rel (%p272) target = $region16
        $region15: #{tpu_custom_call.1} parent=11 // pred_region
          %s276 = ssub.s32 512, 512
          %277 = vsyncadd [#allocation8], %s276
          %s278 = sshll.u32 [#allocation7], 4
          %s279 = int_to_ptr.vmem [resolvable:$true] %s278
          %284 = dma.hbm_to_vmem [thread:$0]  %s1, 512, %s279, [#allocation8], 128, 128, 8
        $region16: #{tpu_custom_call.1} parent=11 // pred_fallthru
          _
        // Predicated region
        $region17: #{tpu_custom_call.1} parent=11 // pred_check
          %p285 = pneg %p103
        $region18: #{tpu_custom_call.1} parent=11 // pred_check_branch
          %287 = sbr.rel (%p285) target = $region20
        $region19: #{tpu_custom_call.1} parent=11 // pred_region
          _
        $region20: #{tpu_custom_call.1} parent=11 // pred_fallthru
          _
        // Predicated region
        $region21: #{tpu_custom_call.1} parent=11 // pred_check
          %p288 = pneg %p124
        $region22: #{tpu_custom_call.1} parent=11 // pred_check_branch
          %290 = sbr.rel (%p288) target = $region24
        $region23: #{tpu_custom_call.1} parent=11 // pred_region
          %s292 = ssub.s32 512, 512
          %293 = vsyncadd [#allocation8], %s292
          %s294 = sshll.u32 [#allocation9], 4
          %s295 = int_to_ptr.vmem [resolvable:$true] %s294
          %300 = dma.hbm_to_vmem [thread:$0]  %s3, 512, %s295, [#allocation8], 128, 128, 8
        $region24: #{tpu_custom_call.1} parent=11 // pred_fallthru
          _
        // Predicated region
        $region25: #{tpu_custom_call.1} parent=11 // pred_check
          %p301 = pneg %p145
        $region26: #{tpu_custom_call.1} parent=11 // pred_check_branch
          %303 = sbr.rel (%p301) target = $region28
        $region27: #{tpu_custom_call.1} parent=11 // pred_region
          _
        $region28: #{tpu_custom_call.1} parent=11 // pred_fallthru
          _
        // Predicated region
        $region29: #{tpu_custom_call.1} parent=11 // pred_check
          %p304 = pneg %p166
        $region30: #{tpu_custom_call.1} parent=11 // pred_check_branch
          %306 = sbr.rel (%p304) target = $region32
        $region31: #{tpu_custom_call.1} parent=11 // pred_region
          %s308 = ssub.s32 512, 512
          %309 = vsyncadd [#allocation11], %s308
          %s310 = sshll.u32 [#allocation10], 4
          %s311 = int_to_ptr.vmem [resolvable:$true] %s310
          %316 = dma.hbm_to_vmem [thread:$0]  %s5, 512, %s311, [#allocation11], 128, 128, 8
        $region32: #{tpu_custom_call.1} parent=11 // pred_fallthru
          _
        // Predicated region
        $region33: #{tpu_custom_call.1} parent=11 // pred_check
          %p317 = pneg %p187
        $region34: #{tpu_custom_call.1} parent=11 // pred_check_branch
          %319 = sbr.rel (%p317) target = $region36
        $region35: #{tpu_custom_call.1} parent=11 // pred_region
          _
        $region36: #{tpu_custom_call.1} parent=11 // pred_fallthru
          _
        // Predicated region
        $region37: #{tpu_custom_call.1} parent=11 // pred_check
          %p320 = pneg %p208
        $region38: #{tpu_custom_call.1} parent=11 // pred_check_branch
          %322 = sbr.rel (%p320) target = $region40
        $region39: #{tpu_custom_call.1} parent=11 // pred_region
          %s324 = ssub.s32 512, 512
          %325 = vsyncadd [#allocation11], %s324
          %s326 = sshll.u32 [#allocation12], 4
          %s327 = int_to_ptr.vmem [resolvable:$true] %s326
          %332 = dma.hbm_to_vmem [thread:$0]  %s7, 512, %s327, [#allocation11], 128, 128, 8
        $region40: #{tpu_custom_call.1} parent=11 // pred_fallthru
          _
        // Predicated region
        $region41: #{tpu_custom_call.1} parent=11 // pred_check
          %p333 = pneg %p229
        $region42: #{tpu_custom_call.1} parent=11 // pred_check_branch
          %335 = sbr.rel (%p333) target = $region44
        $region43: #{tpu_custom_call.1} parent=11 // pred_region
          _
        $region44: #{tpu_custom_call.1} parent=11 // pred_fallthru
          _
      $region12: #{tpu_custom_call.1} parent=5 // pred_fallthru
        _
      %p336 = scmp.lt.s32.totalorder %s23, 2
      // Predicated region
      $region45: #{tpu_custom_call.1} parent=5 // pred_check
        %p337 = pneg %p336
      $region46: #{tpu_custom_call.1} parent=5 // pred_check_branch
        %339 = sbr.rel (%p337) target = $region48
      $region47: #{tpu_custom_call.1} parent=5 // pred_region
        // Predicated region
        $region49: #{tpu_custom_call.1} parent=47 // pred_check
          %p340 = pneg %p55
        $region50: #{tpu_custom_call.1} parent=47 // pred_check_branch
          %342 = sbr.rel (%p340) target = $region52
        $region51: #{tpu_custom_call.1} parent=47 // pred_region
          %s343 = sand.u32 %s45, 1
          %s344 = scalar_lea.sflag [#allocation5], %s343
          %s345 = sand.u32 %s45, 1
          %s346 = smul.addr %s345, 8
          %s347 = scalar_lea.vmem [#allocation4], %s346
          %s349 = ssub.s32 128, 128
          %350 = vsyncadd %s344, %s349
          %s351 = smul.addr %s30, 128
          %s352 = scalar_lea.hbm %s0, %s351
          %s354 = sshll.u32 %s347, 4
          %s355 = int_to_ptr.vmem [resolvable:$true] %s354
          %357 = dma.hbm_to_vmem [thread:$0]  %s352, 128, %s355, %s344
        $region52: #{tpu_custom_call.1} parent=47 // pred_fallthru
          _
      $region48: #{tpu_custom_call.1} parent=5 // pred_fallthru
        _
      %p358 = scmp.le.s32.totalorder 1, %s23
      %p359 = scmp.lt.s32.totalorder %s23, 3
      %p360 = pnand %p358, %p359
      %p361 = pneg %p360
      // Predicated region
      $region53: #{tpu_custom_call.1} parent=5 // pred_check
        _
      $region54: #{tpu_custom_call.1} parent=5 // pred_check_branch
        %363 = sbr.rel (%p360) target = $region56
      $region55: #{tpu_custom_call.1} parent=5 // pred_region
        %s364 = ssub.s32 %s23, 1
        %s365 = sand.u32 %s48, 1
        %s366 = scalar_lea.sflag [#allocation5], %s365
        %s367 = sand.u32 %s48, 1
        %s368 = smul.addr %s367, 8
        %s369 = scalar_lea.vmem [#allocation4], %s368
        // Predicated region
        $region57: #{tpu_custom_call.1} parent=55 // pred_check
          %p370 = pneg %p61
        $region58: #{tpu_custom_call.1} parent=55 // pred_check_branch
          %372 = sbr.rel (%p370) target = $region60
        $region59: #{tpu_custom_call.1} parent=55 // pred_region
          %373 = dma.done %s366, 128
        $region60: #{tpu_custom_call.1} parent=55 // pred_fallthru
          _
        // Predicated region
        $region61: #{tpu_custom_call.1} parent=55 // pred_check
          %p374 = pneg %p82
        $region62: #{tpu_custom_call.1} parent=55 // pred_check_branch
          %376 = sbr.rel (%p374) target = $region64
        $region63: #{tpu_custom_call.1} parent=55 // pred_region
          %377 = dma.done [#allocation8], 512
        $region64: #{tpu_custom_call.1} parent=55 // pred_fallthru
          _
        // Predicated region
        $region65: #{tpu_custom_call.1} parent=55 // pred_check
          %p378 = pneg %p124
        $region66: #{tpu_custom_call.1} parent=55 // pred_check_branch
          %380 = sbr.rel (%p378) target = $region68
        $region67: #{tpu_custom_call.1} parent=55 // pred_region
          %381 = dma.done [#allocation8], 512
        $region68: #{tpu_custom_call.1} parent=55 // pred_fallthru
          _
        // Predicated region
        $region69: #{tpu_custom_call.1} parent=55 // pred_check
          %p382 = pneg %p166
        $region70: #{tpu_custom_call.1} parent=55 // pred_check_branch
          %384 = sbr.rel (%p382) target = $region72
        $region71: #{tpu_custom_call.1} parent=55 // pred_region
          %385 = dma.done [#allocation11], 512
        $region72: #{tpu_custom_call.1} parent=55 // pred_fallthru
          _
        // Predicated region
        $region73: #{tpu_custom_call.1} parent=55 // pred_check
          %p386 = pneg %p208
        $region74: #{tpu_custom_call.1} parent=55 // pred_check_branch
          %388 = sbr.rel (%p386) target = $region76
        $region75: #{tpu_custom_call.1} parent=55 // pred_region
          %389 = dma.done [#allocation11], 512
        $region76: #{tpu_custom_call.1} parent=55 // pred_fallthru
          _
        %s390 = sand.u32 %s48, 1
        %s391 = scalar_lea.sflag [#allocation5], %s390
        %s392 = sand.u32 %s48, 1
        %s393 = smul.addr %s392, 8
        %s394 = scalar_lea.vmem [#allocation4], %s393
        %p395 = pneg %p61
        %p396 = pneg %p58
        %p397 = pneg %p82
        %p398 = pneg %p79
        %p399 = pneg %p103
        %p400 = pneg %p100
        %p401 = pneg %p124
        %p402 = pneg %p121
        %p403 = pneg %p145
        %p404 = pneg %p142
        %p405 = pneg %p166
        %p406 = pneg %p163
        %p407 = pneg %p187
        %p408 = pneg %p184
        %p409 = pneg %p208
        %p410 = pneg %p205
        %p411 = pneg %p229
        %p412 = pneg %p226
        %p413 = pneg %p257
        %p414 = pneg %p254
        %s415 = sand.u32 %s244, 1
        %s416 = scalar_lea.sflag [#allocation6], %s415
        %s417 = sand.u32 %s244, 1
        %s418 = smul.addr %s417, 8
        %s419 = scalar_lea.vmem [#allocation13], %s418
        %p420 = scmp.eq.s32.totalorder %s33, 0
        // Predicated region
        $region77: #{tpu_custom_call.1} parent=55 // pred_check
          %p421 = pneg %p420
        $region78: #{tpu_custom_call.1} parent=55 // pred_check_branch
          %423 = sbr.rel (%p421) target = $region80
        $region79: #{tpu_custom_call.1} parent=55 // pred_region
          %v424 = vld [vmem:[%s369] sm:$0xff]
          %v425 = vld [vmem:[#allocation9] sm:$0xff]
          %v426 = vld [vmem:[#allocation9 + $0x8] sm:$0xff]
          %v427 = vld [vmem:[#allocation9 + $0x10] sm:$0xff]
          %v428 = vld [vmem:[#allocation9 + $0x18] sm:$0xff]
          %v429 = vld [vmem:[%s4] sm:$0x1]
          %v431 = vlaneseq
          %v432 = vshrl.u32 %v431, 7
          %v433 = vsub.s32 0, %v432
          %v434 = vrot.slane %v429, %v433
          %vm436 = vcmask 261120
          %v438 = vsel %vm436, %v424, 0
          %440 = vmatprep.subr.mxu0 0.0
          %441 = vmatpush1.msra.mxu0 0.0
          %442 = vmatprep.subr.mxu0 0.0
          %443 = vmatpush1.msra.mxu0 0.0
          %444 = vmatprep.subr.mxu0 0.0
          %445 = vmatpush1.msra.mxu0 0.0
          %446 = vmatprep.subr.mxu0 0.0
          %447 = vmatpush1.msra.mxu0 0.0
          %448 = vmatprep.subr.mxu0 0.0
          %449 = vmatpush1.msra.mxu0 0.0
          %450 = vmatprep.subr.mxu0 0.0
          %451 = vmatpush1.msra.mxu0 0.0
          %452 = vmatprep.subr.mxu0 0.0
          %453 = vmatpush1.msra.mxu0 0.0
          %454 = vmatprep.subr.mxu0 0.0
          %455 = vmatpush1.msra.mxu0 0.0
          %456 = vmatprep.subr.mxu0 0.0
          %457 = vmatpush1.msra.mxu0 0.0
          %458 = vmatprep.subr.mxu0 0.0
          %459 = vmatpush1.msra.mxu0 0.0
          %460 = vmatprep.subr.mxu0 0.0
          %461 = vmatpush1.msra.mxu0 0.0
          %462 = vmatprep.subr.mxu0 0.0
          %463 = vmatpush1.msra.mxu0 0.0
          %464 = vmatprep.subr.mxu0 0.0
          %465 = vmatpush1.msra.mxu0 %v428
          %466 = vmatprep.subr.mxu0 0.0
          %467 = vmatpush1.msra.mxu0 %v427
          %468 = vmatprep.subr.mxu0 0.0
          %469 = vmatpush1.msra.mxu0 %v426
          %470 = vmatprep.subr.mxu0 0.0
          %471 = vmatpush1.msra.mxu0 %v425
          %472 = vmatprep.subr.mxu0 0.0
          %473 = vmatpush2.msra.mxu0 0.0
          %474 = vmatprep.subr.mxu0 0.0
          %475 = vmatpush2.msra.mxu0 0.0
          %476 = vmatprep.subr.mxu0 0.0
          %477 = vmatpush2.msra.mxu0 0.0
          %478 = vmatprep.subr.mxu0 0.0
          %479 = vmatpush2.msra.mxu0 0.0
          %480 = vmatprep.subr.mxu0 0.0
          %481 = vmatpush2.msra.mxu0 0.0
          %482 = vmatprep.subr.mxu0 0.0
          %483 = vmatpush2.msra.mxu0 0.0
          %484 = vmatprep.subr.mxu0 0.0
          %485 = vmatpush2.msra.mxu0 0.0
          %486 = vmatprep.subr.mxu0 0.0
          %487 = vmatpush2.msra.mxu0 0.0
          %488 = vmatprep.subr.mxu0 0.0
          %489 = vmatpush2.msra.mxu0 0.0
          %490 = vmatprep.subr.mxu0 0.0
          %491 = vmatpush2.msra.mxu0 0.0
          %492 = vmatprep.subr.mxu0 0.0
          %493 = vmatpush2.msra.mxu0 0.0
          %494 = vmatprep.subr.mxu0 0.0
          %495 = vmatpush2.msra.mxu0 0.0
          %496 = vmatprep.subr.mxu0 0.0
          %497 = vmatpush2.msra.mxu0 0.0
          %498 = vmatprep.subr.mxu0 0.0
          %499 = vmatpush2.msra.mxu0 0.0
          %500 = vmatprep.subr.mxu0 0.0
          %501 = vmatpush2.msra.mxu0 0.0
          %502 = vmatprep.subr.mxu0 0.0
          %503 = vmatpush2.msra.mxu0 0.0
          %504 = vmatprep.mubr.f32.mxu0 0.0
          %505 = vmatmul.mubr.f32.gmra.mxu0 %v438
          %v506 = vpop.f32.mrf.mxu0
          %v507 = vadd.f32 %v434, %v506
          %v508 = vpop.f32.mrf.mxu0
          %509 = vdwg.mxu0
          %v510 = vld [vmem:[#allocation10] sm:$0xff]
          %v511 = vld [vmem:[#allocation10 + $0x8] sm:$0xff]
          %v512 = vld [vmem:[#allocation10 + $0x10] sm:$0xff]
          %v513 = vld [vmem:[#allocation10 + $0x18] sm:$0xff]
          %v514 = vld [vmem:[%s6] sm:$0x1]
          %v516 = vlaneseq
          %v517 = vshrl.u32 %v516, 7
          %v518 = vsub.s32 0, %v517
          %v519 = vrot.slane %v514, %v518
          %521 = vmatprep.subr.mxu0 0.0
          %522 = vmatpush1.msra.mxu0 0.0
          %523 = vmatprep.subr.mxu0 0.0
          %524 = vmatpush1.msra.mxu0 0.0
          %525 = vmatprep.subr.mxu0 0.0
          %526 = vmatpush1.msra.mxu0 0.0
          %527 = vmatprep.subr.mxu0 0.0
          %528 = vmatpush1.msra.mxu0 0.0
          %529 = vmatprep.subr.mxu0 0.0
          %530 = vmatpush1.msra.mxu0 0.0
          %531 = vmatprep.subr.mxu0 0.0
          %532 = vmatpush1.msra.mxu0 0.0
          %533 = vmatprep.subr.mxu0 0.0
          %534 = vmatpush1.msra.mxu0 0.0
          %535 = vmatprep.subr.mxu0 0.0
          %536 = vmatpush1.msra.mxu0 0.0
          %537 = vmatprep.subr.mxu0 0.0
          %538 = vmatpush1.msra.mxu0 0.0
          %539 = vmatprep.subr.mxu0 0.0
          %540 = vmatpush1.msra.mxu0 0.0
          %541 = vmatprep.subr.mxu0 0.0
          %542 = vmatpush1.msra.mxu0 0.0
          %543 = vmatprep.subr.mxu0 0.0
          %544 = vmatpush1.msra.mxu0 0.0
          %545 = vmatprep.subr.mxu0 0.0
          %546 = vmatpush1.msra.mxu0 %v513
          %547 = vmatprep.subr.mxu0 0.0
          %548 = vmatpush1.msra.mxu0 %v512
          %549 = vmatprep.subr.mxu0 0.0
          %550 = vmatpush1.msra.mxu0 %v511
          %551 = vmatprep.subr.mxu0 0.0
          %552 = vmatpush1.msra.mxu0 %v510
          %553 = vmatprep.subr.mxu0 0.0
          %554 = vmatpush2.msra.mxu0 0.0
          %555 = vmatprep.subr.mxu0 0.0
          %556 = vmatpush2.msra.mxu0 0.0
          %557 = vmatprep.subr.mxu0 0.0
          %558 = vmatpush2.msra.mxu0 0.0
          %559 = vmatprep.subr.mxu0 0.0
          %560 = vmatpush2.msra.mxu0 0.0
          %561 = vmatprep.subr.mxu0 0.0
          %562 = vmatpush2.msra.mxu0 0.0
          %563 = vmatprep.subr.mxu0 0.0
          %564 = vmatpush2.msra.mxu0 0.0
          %565 = vmatprep.subr.mxu0 0.0
          %566 = vmatpush2.msra.mxu0 0.0
          %567 = vmatprep.subr.mxu0 0.0
          %568 = vmatpush2.msra.mxu0 0.0
          %569 = vmatprep.subr.mxu0 0.0
          %570 = vmatpush2.msra.mxu0 0.0
          %571 = vmatprep.subr.mxu0 0.0
          %572 = vmatpush2.msra.mxu0 0.0
          %573 = vmatprep.subr.mxu0 0.0
          %574 = vmatpush2.msra.mxu0 0.0
          %575 = vmatprep.subr.mxu0 0.0
          %576 = vmatpush2.msra.mxu0 0.0
          %577 = vmatprep.subr.mxu0 0.0
          %578 = vmatpush2.msra.mxu0 0.0
          %579 = vmatprep.subr.mxu0 0.0
          %580 = vmatpush2.msra.mxu0 0.0
          %581 = vmatprep.subr.mxu0 0.0
          %582 = vmatpush2.msra.mxu0 0.0
          %583 = vmatprep.subr.mxu0 0.0
          %584 = vmatpush2.msra.mxu0 0.0
          %585 = vmatprep.mubr.f32.mxu0 0.0
          %586 = vmatmul.mubr.f32.gmra.mxu0 %v438
          %v587 = vpop.f32.mrf.mxu0
          %v588 = vadd.f32 %v519, %v587
          %v589 = vpop.f32.mrf.mxu0
          %590 = vdwg.mxu0
          %vm591 = vcmask 64512
          %592 = vst.msk [vmem:[#allocation2] sm:$0xff] %vm591, %v507
          %593 = vst.msk [vmem:[#allocation3] sm:$0xff] %vm591, %v588
          %595 = vrot.lane.b32.xlu0 %v507, 120
          %v596 = vpop.permute.xlu0 %595
          %s598 = scalar_lea.vmem [#allocation2], 8
          %599 = vst.msk [vmem:[%s598] sm:$0xff] %vm591, %v596
          %601 = vrot.lane.b32.xlu0 %v588, 120
          %v602 = vpop.permute.xlu0 %601
          %s604 = scalar_lea.vmem [#allocation3], 8
          %605 = vst.msk [vmem:[%s604] sm:$0xff] %vm591, %v602
          %606 = vrot.lane.b32.xlu0 %v507, 112
          %v607 = vpop.permute.xlu0 %606
          %s609 = scalar_lea.vmem [#allocation2], 16
          %610 = vst.msk [vmem:[%s609] sm:$0xff] %vm591, %v607
          %611 = vrot.lane.b32.xlu0 %v588, 112
          %v612 = vpop.permute.xlu0 %611
          %s614 = scalar_lea.vmem [#allocation3], 16
          %615 = vst.msk [vmem:[%s614] sm:$0xff] %vm591, %v612
          %616 = vrot.lane.b32.xlu0 %v507, 104
          %v617 = vpop.permute.xlu0 %616
          %s619 = scalar_lea.vmem [#allocation2], 24
          %620 = vst.msk [vmem:[%s619] sm:$0xff] %vm591, %v617
          %621 = vrot.lane.b32.xlu0 %v588, 104
          %v622 = vpop.permute.xlu0 %621
          %s624 = scalar_lea.vmem [#allocation3], 24
          %625 = vst.msk [vmem:[%s624] sm:$0xff] %vm591, %v622
        $region80: #{tpu_custom_call.1} parent=55 // pred_fallthru
          _
        %s626 = smul.u32 %s33, 8
        %s627 = scalar_lea.vmem %s369, %s626 [#allocation4]
        %v628 = vld [vmem:[%s627] sm:$0xff]
        %v629 = vld [vmem:[#allocation7] sm:$0xff]
        %v630 = vld [vmem:[#allocation7 + $0x8] sm:$0xff]
        %v631 = vld [vmem:[#allocation7 + $0x10] sm:$0xff]
        %v632 = vld [vmem:[#allocation7 + $0x18] sm:$0xff]
        %v633 = vld [vmem:[%s2] sm:$0x1]
        %v635 = vlaneseq
        %v636 = vshrl.u32 %v635, 7
        %v637 = vsub.s32 0, %v636
        %v638 = vrot.slane %v633, %v637
        %vm640 = vcmask 261120
        %v642 = vsel %vm640, %v628, 0
        %644 = vmatprep.subr.mxu0 0.0
        %645 = vmatpush1.msra.mxu0 0.0
        %646 = vmatprep.subr.mxu0 0.0
        %647 = vmatpush1.msra.mxu0 0.0
        %648 = vmatprep.subr.mxu0 0.0
        %649 = vmatpush1.msra.mxu0 0.0
        %650 = vmatprep.subr.mxu0 0.0
        %651 = vmatpush1.msra.mxu0 0.0
        %652 = vmatprep.subr.mxu0 0.0
        %653 = vmatpush1.msra.mxu0 0.0
        %654 = vmatprep.subr.mxu0 0.0
        %655 = vmatpush1.msra.mxu0 0.0
        %656 = vmatprep.subr.mxu0 0.0
        %657 = vmatpush1.msra.mxu0 0.0
        %658 = vmatprep.subr.mxu0 0.0
        %659 = vmatpush1.msra.mxu0 0.0
        %660 = vmatprep.subr.mxu0 0.0
        %661 = vmatpush1.msra.mxu0 0.0
        %662 = vmatprep.subr.mxu0 0.0
        %663 = vmatpush1.msra.mxu0 0.0
        %664 = vmatprep.subr.mxu0 0.0
        %665 = vmatpush1.msra.mxu0 0.0
        %666 = vmatprep.subr.mxu0 0.0
        %667 = vmatpush1.msra.mxu0 0.0
        %668 = vmatprep.subr.mxu0 0.0
        %669 = vmatpush1.msra.mxu0 %v632
        %670 = vmatprep.subr.mxu0 0.0
        %671 = vmatpush1.msra.mxu0 %v631
        %672 = vmatprep.subr.mxu0 0.0
        %673 = vmatpush1.msra.mxu0 %v630
        %674 = vmatprep.subr.mxu0 0.0
        %675 = vmatpush1.msra.mxu0 %v629
        %676 = vmatprep.subr.mxu0 0.0
        %677 = vmatpush2.msra.mxu0 0.0
        %678 = vmatprep.subr.mxu0 0.0
        %679 = vmatpush2.msra.mxu0 0.0
        %680 = vmatprep.subr.mxu0 0.0
        %681 = vmatpush2.msra.mxu0 0.0
        %682 = vmatprep.subr.mxu0 0.0
        %683 = vmatpush2.msra.mxu0 0.0
        %684 = vmatprep.subr.mxu0 0.0
        %685 = vmatpush2.msra.mxu0 0.0
        %686 = vmatprep.subr.mxu0 0.0
        %687 = vmatpush2.msra.mxu0 0.0
        %688 = vmatprep.subr.mxu0 0.0
        %689 = vmatpush2.msra.mxu0 0.0
        %690 = vmatprep.subr.mxu0 0.0
        %691 = vmatpush2.msra.mxu0 0.0
        %692 = vmatprep.subr.mxu0 0.0
        %693 = vmatpush2.msra.mxu0 0.0
        %694 = vmatprep.subr.mxu0 0.0
        %695 = vmatpush2.msra.mxu0 0.0
        %696 = vmatprep.subr.mxu0 0.0
        %697 = vmatpush2.msra.mxu0 0.0
        %698 = vmatprep.subr.mxu0 0.0
        %699 = vmatpush2.msra.mxu0 0.0
        %700 = vmatprep.subr.mxu0 0.0
        %701 = vmatpush2.msra.mxu0 0.0
        %702 = vmatprep.subr.mxu0 0.0
        %703 = vmatpush2.msra.mxu0 0.0
        %704 = vmatprep.subr.mxu0 0.0
        %705 = vmatpush2.msra.mxu0 0.0
        %706 = vmatprep.subr.mxu0 0.0
        %707 = vmatpush2.msra.mxu0 0.0
        %708 = vmatprep.mubr.f32.mxu0 0.0
        %709 = vmatmul.mubr.f32.gmra.mxu0 %v642
        %v710 = vpop.f32.mrf.mxu0
        %v711 = vadd.f32 %v638, %v710
        %v712 = vpop.f32.mrf.mxu0
        %713 = vdwg.mxu0
        %715 = vrot.lane.b32.xlu0 %v711, 120
        %v716 = vpop.permute.xlu0 %715
        %717 = vrot.lane.b32.xlu0 %v711, 112
        %v718 = vpop.permute.xlu0 %717
        %719 = vrot.lane.b32.xlu0 %v711, 104
        %v720 = vpop.permute.xlu0 %719
        %v721 = vld [vmem:[#allocation2] sm:$0xff]
        %v722 = vld [vmem:[#allocation2 + $0x8] sm:$0xff]
        %v723 = vld [vmem:[#allocation2 + $0x10] sm:$0xff]
        %v724 = vld [vmem:[#allocation2 + $0x18] sm:$0xff]
        %v725 = vld [vmem:[#allocation3] sm:$0xff]
        %v726 = vld [vmem:[#allocation3 + $0x8] sm:$0xff]
        %v727 = vld [vmem:[#allocation3 + $0x10] sm:$0xff]
        %v728 = vld [vmem:[#allocation3 + $0x18] sm:$0xff]
        %vm729 = vcmask 64512
        %v730 = vsel %vm729, %v711, 0
        %v733 = vsel %vm729, %v721, 0
        %735 = vmatprep.subr.mxu0 0.0
        %736 = vmatpush1.xpose.msra.mxu0 0.0
        %737 = vmatprep.subr.mxu0 0.0
        %738 = vmatpush1.xpose.msra.mxu0 0.0
        %739 = vmatprep.subr.mxu0 0.0
        %740 = vmatpush1.xpose.msra.mxu0 0.0
        %741 = vmatprep.subr.mxu0 0.0
        %742 = vmatpush1.xpose.msra.mxu0 0.0
        %743 = vmatprep.subr.mxu0 0.0
        %744 = vmatpush1.xpose.msra.mxu0 0.0
        %745 = vmatprep.subr.mxu0 0.0
        %746 = vmatpush1.xpose.msra.mxu0 0.0
        %747 = vmatprep.subr.mxu0 0.0
        %748 = vmatpush1.xpose.msra.mxu0 0.0
        %749 = vmatprep.subr.mxu0 0.0
        %750 = vmatpush1.xpose.msra.mxu0 0.0
        %751 = vmatprep.subr.mxu0 0.0
        %752 = vmatpush1.xpose.msra.mxu0 0.0
        %753 = vmatprep.subr.mxu0 0.0
        %754 = vmatpush1.xpose.msra.mxu0 0.0
        %755 = vmatprep.subr.mxu0 0.0
        %756 = vmatpush1.xpose.msra.mxu0 0.0
        %757 = vmatprep.subr.mxu0 0.0
        %758 = vmatpush1.xpose.msra.mxu0 0.0
        %759 = vmatprep.subr.mxu0 0.0
        %760 = vmatpush1.xpose.msra.mxu0 0.0
        %761 = vmatprep.subr.mxu0 0.0
        %762 = vmatpush1.xpose.msra.mxu0 0.0
        %763 = vmatprep.subr.mxu0 0.0
        %764 = vmatpush1.xpose.msra.mxu0 0.0
        %765 = vmatprep.subr.mxu0 0.0
        %766 = vmatpush1.xpose.msra.mxu0 %v733
        %767 = vmatprep.subr.mxu0 0.0
        %768 = vmatpush2.xpose.msra.mxu0 0.0
        %769 = vmatprep.subr.mxu0 0.0
        %770 = vmatpush2.xpose.msra.mxu0 0.0
        %771 = vmatprep.subr.mxu0 0.0
        %772 = vmatpush2.xpose.msra.mxu0 0.0
        %773 = vmatprep.subr.mxu0 0.0
        %774 = vmatpush2.xpose.msra.mxu0 0.0
        %775 = vmatprep.subr.mxu0 0.0
        %776 = vmatpush2.xpose.msra.mxu0 0.0
        %777 = vmatprep.subr.mxu0 0.0
        %778 = vmatpush2.xpose.msra.mxu0 0.0
        %779 = vmatprep.subr.mxu0 0.0
        %780 = vmatpush2.xpose.msra.mxu0 0.0
        %781 = vmatprep.subr.mxu0 0.0
        %782 = vmatpush2.xpose.msra.mxu0 0.0
        %783 = vmatprep.subr.mxu0 0.0
        %784 = vmatpush2.xpose.msra.mxu0 0.0
        %785 = vmatprep.subr.mxu0 0.0
        %786 = vmatpush2.xpose.msra.mxu0 0.0
        %787 = vmatprep.subr.mxu0 0.0
        %788 = vmatpush2.xpose.msra.mxu0 0.0
        %789 = vmatprep.subr.mxu0 0.0
        %790 = vmatpush2.xpose.msra.mxu0 0.0
        %791 = vmatprep.subr.mxu0 0.0
        %792 = vmatpush2.xpose.msra.mxu0 0.0
        %793 = vmatprep.subr.mxu0 0.0
        %794 = vmatpush2.xpose.msra.mxu0 0.0
        %795 = vmatprep.subr.mxu0 0.0
        %796 = vmatpush2.xpose.msra.mxu0 0.0
        %797 = vmatprep.subr.mxu0 0.0
        %798 = vmatpush2.xpose.msra.mxu0 0.0
        %799 = vmatprep.mubr.f32.mxu0 0.0
        %800 = vmatmul.mubr.f32.gmra.mxu0 %v730
        %v801 = vpop.f32.mrf.mxu0
        %v802 = vadd.f32 0.0, %v801
        %v803 = vpop.f32.mrf.mxu0
        %804 = vdwg.mxu0
        %v805 = vsel %vm729, %v716, 0
        %v808 = vsel %vm729, %v722, 0
        %810 = vmatprep.subr.mxu0 0.0
        %811 = vmatpush1.xpose.msra.mxu0 0.0
        %812 = vmatprep.subr.mxu0 0.0
        %813 = vmatpush1.xpose.msra.mxu0 0.0
        %814 = vmatprep.subr.mxu0 0.0
        %815 = vmatpush1.xpose.msra.mxu0 0.0
        %816 = vmatprep.subr.mxu0 0.0
        %817 = vmatpush1.xpose.msra.mxu0 0.0
        %818 = vmatprep.subr.mxu0 0.0
        %819 = vmatpush1.xpose.msra.mxu0 0.0
        %820 = vmatprep.subr.mxu0 0.0
        %821 = vmatpush1.xpose.msra.mxu0 0.0
        %822 = vmatprep.subr.mxu0 0.0
        %823 = vmatpush1.xpose.msra.mxu0 0.0
        %824 = vmatprep.subr.mxu0 0.0
        %825 = vmatpush1.xpose.msra.mxu0 0.0
        %826 = vmatprep.subr.mxu0 0.0
        %827 = vmatpush1.xpose.msra.mxu0 0.0
        %828 = vmatprep.subr.mxu0 0.0
        %829 = vmatpush1.xpose.msra.mxu0 0.0
        %830 = vmatprep.subr.mxu0 0.0
        %831 = vmatpush1.xpose.msra.mxu0 0.0
        %832 = vmatprep.subr.mxu0 0.0
        %833 = vmatpush1.xpose.msra.mxu0 0.0
        %834 = vmatprep.subr.mxu0 0.0
        %835 = vmatpush1.xpose.msra.mxu0 0.0
        %836 = vmatprep.subr.mxu0 0.0
        %837 = vmatpush1.xpose.msra.mxu0 0.0
        %838 = vmatprep.subr.mxu0 0.0
        %839 = vmatpush1.xpose.msra.mxu0 0.0
        %840 = vmatprep.subr.mxu0 0.0
        %841 = vmatpush1.xpose.msra.mxu0 %v808
        %842 = vmatprep.subr.mxu0 0.0
        %843 = vmatpush2.xpose.msra.mxu0 0.0
        %844 = vmatprep.subr.mxu0 0.0
        %845 = vmatpush2.xpose.msra.mxu0 0.0
        %846 = vmatprep.subr.mxu0 0.0
        %847 = vmatpush2.xpose.msra.mxu0 0.0
        %848 = vmatprep.subr.mxu0 0.0
        %849 = vmatpush2.xpose.msra.mxu0 0.0
        %850 = vmatprep.subr.mxu0 0.0
        %851 = vmatpush2.xpose.msra.mxu0 0.0
        %852 = vmatprep.subr.mxu0 0.0
        %853 = vmatpush2.xpose.msra.mxu0 0.0
        %854 = vmatprep.subr.mxu0 0.0
        %855 = vmatpush2.xpose.msra.mxu0 0.0
        %856 = vmatprep.subr.mxu0 0.0
        %857 = vmatpush2.xpose.msra.mxu0 0.0
        %858 = vmatprep.subr.mxu0 0.0
        %859 = vmatpush2.xpose.msra.mxu0 0.0
        %860 = vmatprep.subr.mxu0 0.0
        %861 = vmatpush2.xpose.msra.mxu0 0.0
        %862 = vmatprep.subr.mxu0 0.0
        %863 = vmatpush2.xpose.msra.mxu0 0.0
        %864 = vmatprep.subr.mxu0 0.0
        %865 = vmatpush2.xpose.msra.mxu0 0.0
        %866 = vmatprep.subr.mxu0 0.0
        %867 = vmatpush2.xpose.msra.mxu0 0.0
        %868 = vmatprep.subr.mxu0 0.0
        %869 = vmatpush2.xpose.msra.mxu0 0.0
        %870 = vmatprep.subr.mxu0 0.0
        %871 = vmatpush2.xpose.msra.mxu0 0.0
        %872 = vmatprep.subr.mxu0 0.0
        %873 = vmatpush2.xpose.msra.mxu0 0.0
        %874 = vmatprep.mubr.f32.mxu0 0.0
        %875 = vmatmul.mubr.f32.gmra.mxu0 %v805
        %v876 = vpop.f32.mrf.mxu0
        %v877 = vadd.f32 0.0, %v876
        %v878 = vpop.f32.mrf.mxu0
        %879 = vdwg.mxu0
        %v880 = vsel %vm729, %v718, 0
        %v883 = vsel %vm729, %v723, 0
        %885 = vmatprep.subr.mxu0 0.0
        %886 = vmatpush1.xpose.msra.mxu0 0.0
        %887 = vmatprep.subr.mxu0 0.0
        %888 = vmatpush1.xpose.msra.mxu0 0.0
        %889 = vmatprep.subr.mxu0 0.0
        %890 = vmatpush1.xpose.msra.mxu0 0.0
        %891 = vmatprep.subr.mxu0 0.0
        %892 = vmatpush1.xpose.msra.mxu0 0.0
        %893 = vmatprep.subr.mxu0 0.0
        %894 = vmatpush1.xpose.msra.mxu0 0.0
        %895 = vmatprep.subr.mxu0 0.0
        %896 = vmatpush1.xpose.msra.mxu0 0.0
        %897 = vmatprep.subr.mxu0 0.0
        %898 = vmatpush1.xpose.msra.mxu0 0.0
        %899 = vmatprep.subr.mxu0 0.0
        %900 = vmatpush1.xpose.msra.mxu0 0.0
        %901 = vmatprep.subr.mxu0 0.0
        %902 = vmatpush1.xpose.msra.mxu0 0.0
        %903 = vmatprep.subr.mxu0 0.0
        %904 = vmatpush1.xpose.msra.mxu0 0.0
        %905 = vmatprep.subr.mxu0 0.0
        %906 = vmatpush1.xpose.msra.mxu0 0.0
        %907 = vmatprep.subr.mxu0 0.0
        %908 = vmatpush1.xpose.msra.mxu0 0.0
        %909 = vmatprep.subr.mxu0 0.0
        %910 = vmatpush1.xpose.msra.mxu0 0.0
        %911 = vmatprep.subr.mxu0 0.0
        %912 = vmatpush1.xpose.msra.mxu0 0.0
        %913 = vmatprep.subr.mxu0 0.0
        %914 = vmatpush1.xpose.msra.mxu0 0.0
        %915 = vmatprep.subr.mxu0 0.0
        %916 = vmatpush1.xpose.msra.mxu0 %v883
        %917 = vmatprep.subr.mxu0 0.0
        %918 = vmatpush2.xpose.msra.mxu0 0.0
        %919 = vmatprep.subr.mxu0 0.0
        %920 = vmatpush2.xpose.msra.mxu0 0.0
        %921 = vmatprep.subr.mxu0 0.0
        %922 = vmatpush2.xpose.msra.mxu0 0.0
        %923 = vmatprep.subr.mxu0 0.0
        %924 = vmatpush2.xpose.msra.mxu0 0.0
        %925 = vmatprep.subr.mxu0 0.0
        %926 = vmatpush2.xpose.msra.mxu0 0.0
        %927 = vmatprep.subr.mxu0 0.0
        %928 = vmatpush2.xpose.msra.mxu0 0.0
        %929 = vmatprep.subr.mxu0 0.0
        %930 = vmatpush2.xpose.msra.mxu0 0.0
        %931 = vmatprep.subr.mxu0 0.0
        %932 = vmatpush2.xpose.msra.mxu0 0.0
        %933 = vmatprep.subr.mxu0 0.0
        %934 = vmatpush2.xpose.msra.mxu0 0.0
        %935 = vmatprep.subr.mxu0 0.0
        %936 = vmatpush2.xpose.msra.mxu0 0.0
        %937 = vmatprep.subr.mxu0 0.0
        %938 = vmatpush2.xpose.msra.mxu0 0.0
        %939 = vmatprep.subr.mxu0 0.0
        %940 = vmatpush2.xpose.msra.mxu0 0.0
        %941 = vmatprep.subr.mxu0 0.0
        %942 = vmatpush2.xpose.msra.mxu0 0.0
        %943 = vmatprep.subr.mxu0 0.0
        %944 = vmatpush2.xpose.msra.mxu0 0.0
        %945 = vmatprep.subr.mxu0 0.0
        %946 = vmatpush2.xpose.msra.mxu0 0.0
        %947 = vmatprep.subr.mxu0 0.0
        %948 = vmatpush2.xpose.msra.mxu0 0.0
        %949 = vmatprep.mubr.f32.mxu0 0.0
        %950 = vmatmul.mubr.f32.gmra.mxu0 %v880
        %v951 = vpop.f32.mrf.mxu0
        %v952 = vadd.f32 0.0, %v951
        %v953 = vpop.f32.mrf.mxu0
        %954 = vdwg.mxu0
        %v955 = vsel %vm729, %v720, 0
        %v958 = vsel %vm729, %v724, 0
        %960 = vmatprep.subr.mxu0 0.0
        %961 = vmatpush1.xpose.msra.mxu0 0.0
        %962 = vmatprep.subr.mxu0 0.0
        %963 = vmatpush1.xpose.msra.mxu0 0.0
        %964 = vmatprep.subr.mxu0 0.0
        %965 = vmatpush1.xpose.msra.mxu0 0.0
        %966 = vmatprep.subr.mxu0 0.0
        %967 = vmatpush1.xpose.msra.mxu0 0.0
        %968 = vmatprep.subr.mxu0 0.0
        %969 = vmatpush1.xpose.msra.mxu0 0.0
        %970 = vmatprep.subr.mxu0 0.0
        %971 = vmatpush1.xpose.msra.mxu0 0.0
        %972 = vmatprep.subr.mxu0 0.0
        %973 = vmatpush1.xpose.msra.mxu0 0.0
        %974 = vmatprep.subr.mxu0 0.0
        %975 = vmatpush1.xpose.msra.mxu0 0.0
        %976 = vmatprep.subr.mxu0 0.0
        %977 = vmatpush1.xpose.msra.mxu0 0.0
        %978 = vmatprep.subr.mxu0 0.0
        %979 = vmatpush1.xpose.msra.mxu0 0.0
        %980 = vmatprep.subr.mxu0 0.0
        %981 = vmatpush1.xpose.msra.mxu0 0.0
        %982 = vmatprep.subr.mxu0 0.0
        %983 = vmatpush1.xpose.msra.mxu0 0.0
        %984 = vmatprep.subr.mxu0 0.0
        %985 = vmatpush1.xpose.msra.mxu0 0.0
        %986 = vmatprep.subr.mxu0 0.0
        %987 = vmatpush1.xpose.msra.mxu0 0.0
        %988 = vmatprep.subr.mxu0 0.0
        %989 = vmatpush1.xpose.msra.mxu0 0.0
        %990 = vmatprep.subr.mxu0 0.0
        %991 = vmatpush1.xpose.msra.mxu0 %v958
        %992 = vmatprep.subr.mxu0 0.0
        %993 = vmatpush2.xpose.msra.mxu0 0.0
        %994 = vmatprep.subr.mxu0 0.0
        %995 = vmatpush2.xpose.msra.mxu0 0.0
        %996 = vmatprep.subr.mxu0 0.0
        %997 = vmatpush2.xpose.msra.mxu0 0.0
        %998 = vmatprep.subr.mxu0 0.0
        %999 = vmatpush2.xpose.msra.mxu0 0.0
        %1000 = vmatprep.subr.mxu0 0.0
        %1001 = vmatpush2.xpose.msra.mxu0 0.0
        %1002 = vmatprep.subr.mxu0 0.0
        %1003 = vmatpush2.xpose.msra.mxu0 0.0
        %1004 = vmatprep.subr.mxu0 0.0
        %1005 = vmatpush2.xpose.msra.mxu0 0.0
        %1006 = vmatprep.subr.mxu0 0.0
        %1007 = vmatpush2.xpose.msra.mxu0 0.0
        %1008 = vmatprep.subr.mxu0 0.0
        %1009 = vmatpush2.xpose.msra.mxu0 0.0
        %1010 = vmatprep.subr.mxu0 0.0
        %1011 = vmatpush2.xpose.msra.mxu0 0.0
        %1012 = vmatprep.subr.mxu0 0.0
        %1013 = vmatpush2.xpose.msra.mxu0 0.0
        %1014 = vmatprep.subr.mxu0 0.0
        %1015 = vmatpush2.xpose.msra.mxu0 0.0
        %1016 = vmatprep.subr.mxu0 0.0
        %1017 = vmatpush2.xpose.msra.mxu0 0.0
        %1018 = vmatprep.subr.mxu0 0.0
        %1019 = vmatpush2.xpose.msra.mxu0 0.0
        %1020 = vmatprep.subr.mxu0 0.0
        %1021 = vmatpush2.xpose.msra.mxu0 0.0
        %1022 = vmatprep.subr.mxu0 0.0
        %1023 = vmatpush2.xpose.msra.mxu0 0.0
        %1024 = vmatprep.mubr.f32.mxu0 0.0
        %1025 = vmatmul.mubr.f32.gmra.mxu0 %v955
        %v1026 = vpop.f32.mrf.mxu0
        %v1027 = vadd.f32 0.0, %v1026
        %v1028 = vpop.f32.mrf.mxu0
        %1029 = vdwg.mxu0
        %v1030 = vsel %vm729, %v802, -inf
        %1031 = vmax.xlane.f32.xlu0 %v1030
        %v1032 = vpop.xlane.xlu0 %1031
        %v1033 = vsel %vm729, %v877, -inf
        %1034 = vmax.xlane.f32.xlu0 %v1033
        %v1035 = vpop.xlane.xlu0 %1034
        %v1036 = vsel %vm729, %v952, -inf
        %1037 = vmax.xlane.f32.xlu0 %v1036
        %v1038 = vpop.xlane.xlu0 %1037
        %v1039 = vsel %vm729, %v1027, -inf
        %1040 = vmax.xlane.f32.xlu0 %v1039
        %v1041 = vpop.xlane.xlu0 %1040
        %v1042 = vsub.f32 %v802, %v1032
        %v1043 = vsub.f32 %v877, %v1035
        %v1044 = vsub.f32 %v952, %v1038
        %v1045 = vsub.f32 %v1027, %v1041
        %v1046 = vmul.f32 %v1042, 1.442695
        %v1047 = vpow.pop %v1046
        %v1048 = vmul.f32 %v1043, 1.442695
        %v1049 = vpow.pop %v1048
        %v1050 = vmul.f32 %v1044, 1.442695
        %v1051 = vpow.pop %v1050
        %v1052 = vmul.f32 %v1045, 1.442695
        %v1053 = vpow.pop %v1052
        %v1054 = vsel %vm729, %v1047, 0.0
        %1055 = vadd.xlane.f32.xlu0 %v1054
        %v1056 = vpop.xlane.xlu0 %1055
        %v1057 = vsel %vm729, %v1049, 0.0
        %1058 = vadd.xlane.f32.xlu0 %v1057
        %v1059 = vpop.xlane.xlu0 %1058
        %v1060 = vsel %vm729, %v1051, 0.0
        %1061 = vadd.xlane.f32.xlu0 %v1060
        %v1062 = vpop.xlane.xlu0 %1061
        %v1063 = vsel %vm729, %v1053, 0.0
        %1064 = vadd.xlane.f32.xlu0 %v1063
        %v1065 = vpop.xlane.xlu0 %1064
        %v1067 = vsel %vm729, %v1047, 0
        %1069 = vmatprep.subr.mxu0 0.0
        %1070 = vmatpush1.msra.mxu0 0.0
        %1071 = vmatprep.subr.mxu0 0.0
        %1072 = vmatpush1.msra.mxu0 0.0
        %1073 = vmatprep.subr.mxu0 0.0
        %1074 = vmatpush1.msra.mxu0 0.0
        %1075 = vmatprep.subr.mxu0 0.0
        %1076 = vmatpush1.msra.mxu0 0.0
        %1077 = vmatprep.subr.mxu0 0.0
        %1078 = vmatpush1.msra.mxu0 0.0
        %1079 = vmatprep.subr.mxu0 0.0
        %1080 = vmatpush1.msra.mxu0 0.0
        %1081 = vmatprep.subr.mxu0 0.0
        %1082 = vmatpush1.msra.mxu0 0.0
        %1083 = vmatprep.subr.mxu0 0.0
        %1084 = vmatpush1.msra.mxu0 0.0
        %1085 = vmatprep.subr.mxu0 0.0
        %1086 = vmatpush1.msra.mxu0 0.0
        %1087 = vmatprep.subr.mxu0 0.0
        %1088 = vmatpush1.msra.mxu0 0.0
        %1089 = vmatprep.subr.mxu0 0.0
        %1090 = vmatpush1.msra.mxu0 0.0
        %1091 = vmatprep.subr.mxu0 0.0
        %1092 = vmatpush1.msra.mxu0 0.0
        %1093 = vmatprep.subr.mxu0 0.0
        %1094 = vmatpush1.msra.mxu0 0.0
        %1095 = vmatprep.subr.mxu0 0.0
        %1096 = vmatpush1.msra.mxu0 0.0
        %1097 = vmatprep.subr.mxu0 0.0
        %1098 = vmatpush1.msra.mxu0 0.0
        %1099 = vmatprep.subr.mxu0 0.0
        %1100 = vmatpush1.msra.mxu0 %v725
        %1101 = vmatprep.subr.mxu0 0.0
        %1102 = vmatpush2.msra.mxu0 0.0
        %1103 = vmatprep.subr.mxu0 0.0
        %1104 = vmatpush2.msra.mxu0 0.0
        %1105 = vmatprep.subr.mxu0 0.0
        %1106 = vmatpush2.msra.mxu0 0.0
        %1107 = vmatprep.subr.mxu0 0.0
        %1108 = vmatpush2.msra.mxu0 0.0
        %1109 = vmatprep.subr.mxu0 0.0
        %1110 = vmatpush2.msra.mxu0 0.0
        %1111 = vmatprep.subr.mxu0 0.0
        %1112 = vmatpush2.msra.mxu0 0.0
        %1113 = vmatprep.subr.mxu0 0.0
        %1114 = vmatpush2.msra.mxu0 0.0
        %1115 = vmatprep.subr.mxu0 0.0
        %1116 = vmatpush2.msra.mxu0 0.0
        %1117 = vmatprep.subr.mxu0 0.0
        %1118 = vmatpush2.msra.mxu0 0.0
        %1119 = vmatprep.subr.mxu0 0.0
        %1120 = vmatpush2.msra.mxu0 0.0
        %1121 = vmatprep.subr.mxu0 0.0
        %1122 = vmatpush2.msra.mxu0 0.0
        %1123 = vmatprep.subr.mxu0 0.0
        %1124 = vmatpush2.msra.mxu0 0.0
        %1125 = vmatprep.subr.mxu0 0.0
        %1126 = vmatpush2.msra.mxu0 0.0
        %1127 = vmatprep.subr.mxu0 0.0
        %1128 = vmatpush2.msra.mxu0 0.0
        %1129 = vmatprep.subr.mxu0 0.0
        %1130 = vmatpush2.msra.mxu0 0.0
        %1131 = vmatprep.subr.mxu0 0.0
        %1132 = vmatpush2.msra.mxu0 0.0
        %1133 = vmatprep.mubr.f32.mxu0 0.0
        %1134 = vmatmul.mubr.f32.gmra.mxu0 %v1067
        %v1135 = vpop.f32.mrf.mxu0
        %v1136 = vadd.f32 0.0, %v1135
        %v1137 = vpop.f32.mrf.mxu0
        %1138 = vdwg.mxu0
        %v1140 = vsel %vm729, %v1049, 0
        %1142 = vmatprep.subr.mxu0 0.0
        %1143 = vmatpush1.msra.mxu0 0.0
        %1144 = vmatprep.subr.mxu0 0.0
        %1145 = vmatpush1.msra.mxu0 0.0
        %1146 = vmatprep.subr.mxu0 0.0
        %1147 = vmatpush1.msra.mxu0 0.0
        %1148 = vmatprep.subr.mxu0 0.0
        %1149 = vmatpush1.msra.mxu0 0.0
        %1150 = vmatprep.subr.mxu0 0.0
        %1151 = vmatpush1.msra.mxu0 0.0
        %1152 = vmatprep.subr.mxu0 0.0
        %1153 = vmatpush1.msra.mxu0 0.0
        %1154 = vmatprep.subr.mxu0 0.0
        %1155 = vmatpush1.msra.mxu0 0.0
        %1156 = vmatprep.subr.mxu0 0.0
        %1157 = vmatpush1.msra.mxu0 0.0
        %1158 = vmatprep.subr.mxu0 0.0
        %1159 = vmatpush1.msra.mxu0 0.0
        %1160 = vmatprep.subr.mxu0 0.0
        %1161 = vmatpush1.msra.mxu0 0.0
        %1162 = vmatprep.subr.mxu0 0.0
        %1163 = vmatpush1.msra.mxu0 0.0
        %1164 = vmatprep.subr.mxu0 0.0
        %1165 = vmatpush1.msra.mxu0 0.0
        %1166 = vmatprep.subr.mxu0 0.0
        %1167 = vmatpush1.msra.mxu0 0.0
        %1168 = vmatprep.subr.mxu0 0.0
        %1169 = vmatpush1.msra.mxu0 0.0
        %1170 = vmatprep.subr.mxu0 0.0
        %1171 = vmatpush1.msra.mxu0 0.0
        %1172 = vmatprep.subr.mxu0 0.0
        %1173 = vmatpush1.msra.mxu0 %v726
        %1174 = vmatprep.subr.mxu0 0.0
        %1175 = vmatpush2.msra.mxu0 0.0
        %1176 = vmatprep.subr.mxu0 0.0
        %1177 = vmatpush2.msra.mxu0 0.0
        %1178 = vmatprep.subr.mxu0 0.0
        %1179 = vmatpush2.msra.mxu0 0.0
        %1180 = vmatprep.subr.mxu0 0.0
        %1181 = vmatpush2.msra.mxu0 0.0
        %1182 = vmatprep.subr.mxu0 0.0
        %1183 = vmatpush2.msra.mxu0 0.0
        %1184 = vmatprep.subr.mxu0 0.0
        %1185 = vmatpush2.msra.mxu0 0.0
        %1186 = vmatprep.subr.mxu0 0.0
        %1187 = vmatpush2.msra.mxu0 0.0
        %1188 = vmatprep.subr.mxu0 0.0
        %1189 = vmatpush2.msra.mxu0 0.0
        %1190 = vmatprep.subr.mxu0 0.0
        %1191 = vmatpush2.msra.mxu0 0.0
        %1192 = vmatprep.subr.mxu0 0.0
        %1193 = vmatpush2.msra.mxu0 0.0
        %1194 = vmatprep.subr.mxu0 0.0
        %1195 = vmatpush2.msra.mxu0 0.0
        %1196 = vmatprep.subr.mxu0 0.0
        %1197 = vmatpush2.msra.mxu0 0.0
        %1198 = vmatprep.subr.mxu0 0.0
        %1199 = vmatpush2.msra.mxu0 0.0
        %1200 = vmatprep.subr.mxu0 0.0
        %1201 = vmatpush2.msra.mxu0 0.0
        %1202 = vmatprep.subr.mxu0 0.0
        %1203 = vmatpush2.msra.mxu0 0.0
        %1204 = vmatprep.subr.mxu0 0.0
        %1205 = vmatpush2.msra.mxu0 0.0
        %1206 = vmatprep.mubr.f32.mxu0 0.0
        %1207 = vmatmul.mubr.f32.gmra.mxu0 %v1140
        %v1208 = vpop.f32.mrf.mxu0
        %v1209 = vadd.f32 0.0, %v1208
        %v1210 = vpop.f32.mrf.mxu0
        %1211 = vdwg.mxu0
        %v1213 = vsel %vm729, %v1051, 0
        %1215 = vmatprep.subr.mxu0 0.0
        %1216 = vmatpush1.msra.mxu0 0.0
        %1217 = vmatprep.subr.mxu0 0.0
        %1218 = vmatpush1.msra.mxu0 0.0
        %1219 = vmatprep.subr.mxu0 0.0
        %1220 = vmatpush1.msra.mxu0 0.0
        %1221 = vmatprep.subr.mxu0 0.0
        %1222 = vmatpush1.msra.mxu0 0.0
        %1223 = vmatprep.subr.mxu0 0.0
        %1224 = vmatpush1.msra.mxu0 0.0
        %1225 = vmatprep.subr.mxu0 0.0
        %1226 = vmatpush1.msra.mxu0 0.0
        %1227 = vmatprep.subr.mxu0 0.0
        %1228 = vmatpush1.msra.mxu0 0.0
        %1229 = vmatprep.subr.mxu0 0.0
        %1230 = vmatpush1.msra.mxu0 0.0
        %1231 = vmatprep.subr.mxu0 0.0
        %1232 = vmatpush1.msra.mxu0 0.0
        %1233 = vmatprep.subr.mxu0 0.0
        %1234 = vmatpush1.msra.mxu0 0.0
        %1235 = vmatprep.subr.mxu0 0.0
        %1236 = vmatpush1.msra.mxu0 0.0
        %1237 = vmatprep.subr.mxu0 0.0
        %1238 = vmatpush1.msra.mxu0 0.0
        %1239 = vmatprep.subr.mxu0 0.0
        %1240 = vmatpush1.msra.mxu0 0.0
        %1241 = vmatprep.subr.mxu0 0.0
        %1242 = vmatpush1.msra.mxu0 0.0
        %1243 = vmatprep.subr.mxu0 0.0
        %1244 = vmatpush1.msra.mxu0 0.0
        %1245 = vmatprep.subr.mxu0 0.0
        %1246 = vmatpush1.msra.mxu0 %v727
        %1247 = vmatprep.subr.mxu0 0.0
        %1248 = vmatpush2.msra.mxu0 0.0
        %1249 = vmatprep.subr.mxu0 0.0
        %1250 = vmatpush2.msra.mxu0 0.0
        %1251 = vmatprep.subr.mxu0 0.0
        %1252 = vmatpush2.msra.mxu0 0.0
        %1253 = vmatprep.subr.mxu0 0.0
        %1254 = vmatpush2.msra.mxu0 0.0
        %1255 = vmatprep.subr.mxu0 0.0
        %1256 = vmatpush2.msra.mxu0 0.0
        %1257 = vmatprep.subr.mxu0 0.0
        %1258 = vmatpush2.msra.mxu0 0.0
        %1259 = vmatprep.subr.mxu0 0.0
        %1260 = vmatpush2.msra.mxu0 0.0
        %1261 = vmatprep.subr.mxu0 0.0
        %1262 = vmatpush2.msra.mxu0 0.0
        %1263 = vmatprep.subr.mxu0 0.0
        %1264 = vmatpush2.msra.mxu0 0.0
        %1265 = vmatprep.subr.mxu0 0.0
        %1266 = vmatpush2.msra.mxu0 0.0
        %1267 = vmatprep.subr.mxu0 0.0
        %1268 = vmatpush2.msra.mxu0 0.0
        %1269 = vmatprep.subr.mxu0 0.0
        %1270 = vmatpush2.msra.mxu0 0.0
        %1271 = vmatprep.subr.mxu0 0.0
        %1272 = vmatpush2.msra.mxu0 0.0
        %1273 = vmatprep.subr.mxu0 0.0
        %1274 = vmatpush2.msra.mxu0 0.0
        %1275 = vmatprep.subr.mxu0 0.0
        %1276 = vmatpush2.msra.mxu0 0.0
        %1277 = vmatprep.subr.mxu0 0.0
        %1278 = vmatpush2.msra.mxu0 0.0
        %1279 = vmatprep.mubr.f32.mxu0 0.0
        %1280 = vmatmul.mubr.f32.gmra.mxu0 %v1213
        %v1281 = vpop.f32.mrf.mxu0
        %v1282 = vadd.f32 0.0, %v1281
        %v1283 = vpop.f32.mrf.mxu0
        %1284 = vdwg.mxu0
        %v1286 = vsel %vm729, %v1053, 0
        %1288 = vmatprep.subr.mxu0 0.0
        %1289 = vmatpush1.msra.mxu0 0.0
        %1290 = vmatprep.subr.mxu0 0.0
        %1291 = vmatpush1.msra.mxu0 0.0
        %1292 = vmatprep.subr.mxu0 0.0
        %1293 = vmatpush1.msra.mxu0 0.0
        %1294 = vmatprep.subr.mxu0 0.0
        %1295 = vmatpush1.msra.mxu0 0.0
        %1296 = vmatprep.subr.mxu0 0.0
        %1297 = vmatpush1.msra.mxu0 0.0
        %1298 = vmatprep.subr.mxu0 0.0
        %1299 = vmatpush1.msra.mxu0 0.0
        %1300 = vmatprep.subr.mxu0 0.0
        %1301 = vmatpush1.msra.mxu0 0.0
        %1302 = vmatprep.subr.mxu0 0.0
        %1303 = vmatpush1.msra.mxu0 0.0
        %1304 = vmatprep.subr.mxu0 0.0
        %1305 = vmatpush1.msra.mxu0 0.0
        %1306 = vmatprep.subr.mxu0 0.0
        %1307 = vmatpush1.msra.mxu0 0.0
        %1308 = vmatprep.subr.mxu0 0.0
        %1309 = vmatpush1.msra.mxu0 0.0
        %1310 = vmatprep.subr.mxu0 0.0
        %1311 = vmatpush1.msra.mxu0 0.0
        %1312 = vmatprep.subr.mxu0 0.0
        %1313 = vmatpush1.msra.mxu0 0.0
        %1314 = vmatprep.subr.mxu0 0.0
        %1315 = vmatpush1.msra.mxu0 0.0
        %1316 = vmatprep.subr.mxu0 0.0
        %1317 = vmatpush1.msra.mxu0 0.0
        %1318 = vmatprep.subr.mxu0 0.0
        %1319 = vmatpush1.msra.mxu0 %v728
        %1320 = vmatprep.subr.mxu0 0.0
        %1321 = vmatpush2.msra.mxu0 0.0
        %1322 = vmatprep.subr.mxu0 0.0
        %1323 = vmatpush2.msra.mxu0 0.0
        %1324 = vmatprep.subr.mxu0 0.0
        %1325 = vmatpush2.msra.mxu0 0.0
        %1326 = vmatprep.subr.mxu0 0.0
        %1327 = vmatpush2.msra.mxu0 0.0
        %1328 = vmatprep.subr.mxu0 0.0
        %1329 = vmatpush2.msra.mxu0 0.0
        %1330 = vmatprep.subr.mxu0 0.0
        %1331 = vmatpush2.msra.mxu0 0.0
        %1332 = vmatprep.subr.mxu0 0.0
        %1333 = vmatpush2.msra.mxu0 0.0
        %1334 = vmatprep.subr.mxu0 0.0
        %1335 = vmatpush2.msra.mxu0 0.0
        %1336 = vmatprep.subr.mxu0 0.0
        %1337 = vmatpush2.msra.mxu0 0.0
        %1338 = vmatprep.subr.mxu0 0.0
        %1339 = vmatpush2.msra.mxu0 0.0
        %1340 = vmatprep.subr.mxu0 0.0
        %1341 = vmatpush2.msra.mxu0 0.0
        %1342 = vmatprep.subr.mxu0 0.0
        %1343 = vmatpush2.msra.mxu0 0.0
        %1344 = vmatprep.subr.mxu0 0.0
        %1345 = vmatpush2.msra.mxu0 0.0
        %1346 = vmatprep.subr.mxu0 0.0
        %1347 = vmatpush2.msra.mxu0 0.0
        %1348 = vmatprep.subr.mxu0 0.0
        %1349 = vmatpush2.msra.mxu0 0.0
        %1350 = vmatprep.subr.mxu0 0.0
        %1351 = vmatpush2.msra.mxu0 0.0
        %1352 = vmatprep.mubr.f32.mxu0 0.0
        %1353 = vmatmul.mubr.f32.gmra.mxu0 %v1286
        %v1354 = vpop.f32.mrf.mxu0
        %v1355 = vadd.f32 0.0, %v1354
        %v1356 = vpop.f32.mrf.mxu0
        %1357 = vdwg.mxu0
        %v1358 = vrcp.pop %v1056
        %v1359 = vmul.f32 1.0, %v1358
        %v1360 = vrcp.pop %v1059
        %v1361 = vmul.f32 1.0, %v1360
        %v1362 = vrcp.pop %v1062
        %v1363 = vmul.f32 1.0, %v1362
        %v1364 = vrcp.pop %v1065
        %v1365 = vmul.f32 1.0, %v1364
        %v1366 = vmul.f32 %v1136, %v1359
        %v1367 = vmul.f32 %v1209, %v1361
        %v1368 = vmul.f32 %v1282, %v1363
        %v1369 = vmul.f32 %v1355, %v1365
        %1371 = vrot.lane.b32.xlu0 %v1367, 8
        %v1372 = vpop.permute.xlu0 %1371
        %1375 = vrot.lane.b32.xlu0 %v1368, 16
        %v1376 = vpop.permute.xlu0 %1375
        %1379 = vrot.lane.b32.xlu0 %v1369, 24
        %v1380 = vpop.permute.xlu0 %1379
        %v1382 = vsel %vm729, %v1366, %v1372
        %vm1383 = vcmask 130048
        %v1384 = vsel %vm1383, %v1382, %v1376
        %vm1385 = vcmask 195584
        %v1386 = vsel %vm1385, %v1384, %v1380
        %v1387 = vld [vmem:[#allocation12] sm:$0xff]
        %v1388 = vld [vmem:[#allocation12 + $0x8] sm:$0xff]
        %v1389 = vld [vmem:[#allocation12 + $0x10] sm:$0xff]
        %v1390 = vld [vmem:[#allocation12 + $0x18] sm:$0xff]
        %v1391 = vld [vmem:[%s8] sm:$0x1]
        %v1393 = vlaneseq
        %v1394 = vshrl.u32 %v1393, 7
        %v1395 = vsub.s32 0, %v1394
        %v1396 = vrot.slane %v1391, %v1395
        %v1399 = vsel %vm640, %v1386, 0
        %1401 = vmatprep.subr.mxu0 0.0
        %1402 = vmatpush1.msra.mxu0 0.0
        %1403 = vmatprep.subr.mxu0 0.0
        %1404 = vmatpush1.msra.mxu0 0.0
        %1405 = vmatprep.subr.mxu0 0.0
        %1406 = vmatpush1.msra.mxu0 0.0
        %1407 = vmatprep.subr.mxu0 0.0
        %1408 = vmatpush1.msra.mxu0 0.0
        %1409 = vmatprep.subr.mxu0 0.0
        %1410 = vmatpush1.msra.mxu0 0.0
        %1411 = vmatprep.subr.mxu0 0.0
        %1412 = vmatpush1.msra.mxu0 0.0
        %1413 = vmatprep.subr.mxu0 0.0
        %1414 = vmatpush1.msra.mxu0 0.0
        %1415 = vmatprep.subr.mxu0 0.0
        %1416 = vmatpush1.msra.mxu0 0.0
        %1417 = vmatprep.subr.mxu0 0.0
        %1418 = vmatpush1.msra.mxu0 0.0
        %1419 = vmatprep.subr.mxu0 0.0
        %1420 = vmatpush1.msra.mxu0 0.0
        %1421 = vmatprep.subr.mxu0 0.0
        %1422 = vmatpush1.msra.mxu0 0.0
        %1423 = vmatprep.subr.mxu0 0.0
        %1424 = vmatpush1.msra.mxu0 0.0
        %1425 = vmatprep.subr.mxu0 0.0
        %1426 = vmatpush1.msra.mxu0 %v1390
        %1427 = vmatprep.subr.mxu0 0.0
        %1428 = vmatpush1.msra.mxu0 %v1389
        %1429 = vmatprep.subr.mxu0 0.0
        %1430 = vmatpush1.msra.mxu0 %v1388
        %1431 = vmatprep.subr.mxu0 0.0
        %1432 = vmatpush1.msra.mxu0 %v1387
        %1433 = vmatprep.subr.mxu0 0.0
        %1434 = vmatpush2.msra.mxu0 0.0
        %1435 = vmatprep.subr.mxu0 0.0
        %1436 = vmatpush2.msra.mxu0 0.0
        %1437 = vmatprep.subr.mxu0 0.0
        %1438 = vmatpush2.msra.mxu0 0.0
        %1439 = vmatprep.subr.mxu0 0.0
        %1440 = vmatpush2.msra.mxu0 0.0
        %1441 = vmatprep.subr.mxu0 0.0
        %1442 = vmatpush2.msra.mxu0 0.0
        %1443 = vmatprep.subr.mxu0 0.0
        %1444 = vmatpush2.msra.mxu0 0.0
        %1445 = vmatprep.subr.mxu0 0.0
        %1446 = vmatpush2.msra.mxu0 0.0
        %1447 = vmatprep.subr.mxu0 0.0
        %1448 = vmatpush2.msra.mxu0 0.0
        %1449 = vmatprep.subr.mxu0 0.0
        %1450 = vmatpush2.msra.mxu0 0.0
        %1451 = vmatprep.subr.mxu0 0.0
        %1452 = vmatpush2.msra.mxu0 0.0
        %1453 = vmatprep.subr.mxu0 0.0
        %1454 = vmatpush2.msra.mxu0 0.0
        %1455 = vmatprep.subr.mxu0 0.0
        %1456 = vmatpush2.msra.mxu0 0.0
        %1457 = vmatprep.subr.mxu0 0.0
        %1458 = vmatpush2.msra.mxu0 0.0
        %1459 = vmatprep.subr.mxu0 0.0
        %1460 = vmatpush2.msra.mxu0 0.0
        %1461 = vmatprep.subr.mxu0 0.0
        %1462 = vmatpush2.msra.mxu0 0.0
        %1463 = vmatprep.subr.mxu0 0.0
        %1464 = vmatpush2.msra.mxu0 0.0
        %1465 = vmatprep.mubr.f32.mxu0 0.0
        %1466 = vmatmul.mubr.f32.gmra.mxu0 %v1399
        %v1467 = vpop.f32.mrf.mxu0
        %v1468 = vadd.f32 %v1396, %v1467
        %v1469 = vpop.f32.mrf.mxu0
        %1470 = vdwg.mxu0
        %1471 = vst.msk [vmem:[%s419] sm:$0xff] %vm640, %v1468
        %s1472 = sand.u32 %s244, 1
        %s1473 = scalar_lea.sflag [#allocation6], %s1472
        %s1474 = sand.u32 %s244, 1
        %s1475 = smul.addr %s1474, 8
        %s1476 = scalar_lea.vmem [#allocation13], %s1475
        // Predicated region
        $region81: #{tpu_custom_call.1} parent=55 // pred_check
          %p1477 = pneg %p254
        $region82: #{tpu_custom_call.1} parent=55 // pred_check_branch
          %1479 = sbr.rel (%p1477) target = $region84
        $region83: #{tpu_custom_call.1} parent=55 // pred_region
          %s1481 = ssub.s32 128, 128
          %1482 = vsyncadd %s1473, %s1481
          %s1483 = sadd.s32 %s33, %s32
          %s1484 = smul.addr %s1483, 128
          %s1485 = scalar_lea.hbm %s9, %s1484
          %s1487 = sshll.u32 %s1476, 4
          %s1488 = int_to_ptr.vmem [resolvable:$true] %s1487
          %1490 = dma.vmem_to_hbm [thread:$0]  %s1488, 128, %s1485, %s1473
        $region84: #{tpu_custom_call.1} parent=55 // pred_fallthru
          _
      $region56: #{tpu_custom_call.1} parent=5 // pred_fallthru
        _
      %p1491 = scmp.le.s32.totalorder 2, %s23
      // Predicated region
      $region85: #{tpu_custom_call.1} parent=5 // pred_check
        %p1492 = pneg %p1491
      $region86: #{tpu_custom_call.1} parent=5 // pred_check_branch
        %1494 = sbr.rel (%p1492) target = $region88
      $region87: #{tpu_custom_call.1} parent=5 // pred_region
        %s1495 = ssub.s32 %s23, 2
        // Predicated region
        $region89: #{tpu_custom_call.1} parent=87 // pred_check
          %p1496 = pneg %p260
        $region90: #{tpu_custom_call.1} parent=87 // pred_check_branch
          %1498 = sbr.rel (%p1496) target = $region92
        $region91: #{tpu_custom_call.1} parent=87 // pred_region
          %s1499 = sand.u32 %s245, 1
          %s1500 = scalar_lea.sflag [#allocation6], %s1499
          %s1501 = sand.u32 %s245, 1
          %s1502 = smul.addr %s1501, 8
          %s1503 = scalar_lea.vmem [#allocation13], %s1502
          %1504 = dma.done %s1500, 128
        $region92: #{tpu_custom_call.1} parent=87 // pred_fallthru
          _
      $region88: #{tpu_custom_call.1} parent=5 // pred_fallthru
        _
    $region6: #{tpu_custom_call.1} parent=1 // loop_footer
      %s27 = sadd.s32 1, %s23
    $region7: #{tpu_custom_call.1} parent=1 // loop_footer_branch
      %22 = sbr.rel target = $region3
    $region8: #{tpu_custom_call.1} parent=1 // loop_exit
      _
    %1505 = vsyncpa [#allocation5], 1
    %s1506 = scalar_lea.sflag [#allocation5], 1
    %1507 = vsyncpa %s1506, 1
    %1508 = vsyncpa [#allocation8], 1
    %1509 = vsyncpa [#allocation11], 1
    %1510 = vsyncpa [#allocation6], 1
    %s1511 = scalar_lea.sflag [#allocation6], 1
    %1512 = vsyncpa %s1511, 1

</llo_original>
